<compile_context>
chip_gen: v7x
topology: tpu7x:2x2x1
jax: 0.10.0
libtpu: 0.0.40
codegen_flags: <defaults>
</compile_context>

<pallas_src>
import functools

import jax
import jax.numpy as jnp
from jax.experimental import pallas as pl
from jax.experimental.pallas import tpu as pltpu


# ---------------------------------------------------------------------------
# Pallas kernel: fused GMF * MLP(DNN) * head * sigmoid for one batch tile
# ---------------------------------------------------------------------------
def _ncf_kernel(
    gmf_u_ref, gmf_i_ref, mlp_u_ref, mlp_i_ref,          # (TB, dim) bf16 each
    w1u_ref, w1i_ref, b1_ref,                            # (dim,32),(dim,32),(1,32)
    w2_ref, b2_ref,                                      # (32,16),(1,16)
    w3_ref, b3_ref,                                      # (16,8),(1,8)
    w4_ref, b4_ref,                                      # (8,8),(1,8)
    hw_g_ref, hw_m_ref,                                  # (1,dim),(1,8)
    hb_ref,                                              # (1,) scalar in SMEM
    out_ref,                                             # (1, TB)
):
    f32 = jnp.float32

    # Cast bf16 embedding rows to f32 right after load (v5e VPU/EUP have no
    # bf16 path; the HBM-bandwidth win is already banked by the bf16 load).
    gmf_u = gmf_u_ref[...].astype(f32)
    gmf_i = gmf_i_ref[...].astype(f32)
    mlp_u = mlp_u_ref[...].astype(f32)
    mlp_i = mlp_i_ref[...].astype(f32)

    # ---- GMF branch: elementwise product of user/item embeddings ----
    gmf = gmf_u * gmf_i                                  # (TB, dim)

    # ---- MLP branch (DNN): concat eliminated via split W1 ----
    y = (jnp.dot(mlp_u, w1u_ref[...], preferred_element_type=f32)
         + jnp.dot(mlp_i, w1i_ref[...], preferred_element_type=f32)
         + b1_ref[...])
    y = jnp.maximum(y, 0.0)                              # (TB, 32)

    y = jnp.dot(y, w2_ref[...], preferred_element_type=f32) + b2_ref[...]
    y = jnp.maximum(y, 0.0)                              # (TB, 16)

    y = jnp.dot(y, w3_ref[...], preferred_element_type=f32) + b3_ref[...]
    y = jnp.maximum(y, 0.0)                              # (TB, 8)

    y = jnp.dot(y, w4_ref[...], preferred_element_type=f32) + b4_ref[...]
    y = jnp.maximum(y, 0.0)                              # (TB, 8)

    # ---- Head: h(concat([gmf, mlp])) == gmf.hw_g + mlp.hw_m + hb ----
    # Contract the feature axis of the (1, d) weight row against the feature
    # axis of the (TB, d) activations (q.kT orientation) so the result is a
    # lane-dense (1, TB) vector that stores with full-width vst.
    dn = (((1,), (1,)), ((), ()))
    logit = (jax.lax.dot_general(hw_g_ref[...], gmf, dn,
                                 preferred_element_type=f32)
             + jax.lax.dot_general(hw_m_ref[...], y, dn,
                                   preferred_element_type=f32)
             + hb_ref[0])                                # (1, TB)

    out_ref[...] = jax.nn.sigmoid(logit)


# ---------------------------------------------------------------------------
# Wrapper: embedding gathers (glue) + tiled pallas_call
# ---------------------------------------------------------------------------
@functools.partial(jax.jit, static_argnames=("tb",))
def ncf_forward(params, users_id, items_id, *, tb=128):
    dim = params["gmf_user_emb"].shape[1]
    B = users_id.shape[0]

    grid_b = pl.cdiv(B, tb)
    b_pad = grid_b * tb
    pad = b_pad - B
    u_ids = jnp.pad(users_id, (0, pad))                  # pad with id 0 (valid)
    i_ids = jnp.pad(items_id, (0, pad))

    # Embedding gathers (bf16 rows).  TODO(synk): fuse gather into the kernel.
    gmf_u = params["gmf_user_emb"][u_ids]                # (B_pad, dim) bf16
    gmf_i = params["gmf_item_emb"][i_ids]
    mlp_u = params["mlp_user_emb"][u_ids]
    mlp_i = params["mlp_item_emb"][i_ids]

    # Pre-transposed weights (in_features, out_features); split concat halves.
    w1 = params["l1_w"]                                  # (2*dim, 32)
    w1u, w1i = w1[:dim], w1[dim:]
    hw = params["h_w"]                                   # (dim+8, 1)
    hw_g = hw[:dim].reshape(1, dim)                      # (1, dim)
    hw_m = hw[dim:].reshape(1, 8)                        # (1, 8)

    b1 = params["l1_b"].reshape(1, -1)
    b2 = params["l2_b"].reshape(1, -1)
    b3 = params["l3_b"].reshape(1, -1)
    b4 = params["l4_b"].reshape(1, -1)
    hb = params["h_b"].reshape(1)                        # scalar -> SMEM

    def emb_spec():
        # Batch-tiled (TB, dim) blocks, streamed/pipelined over the grid.
        return pl.BlockSpec((tb, dim), lambda b: (b, 0))

    def resident_spec(shape):
        # Full-array block with a constant index_map -> stays VMEM-resident.
        return pl.BlockSpec(shape, lambda b: (0, 0))

    in_specs = [
        emb_spec(), emb_spec(), emb_spec(), emb_spec(),
        resident_spec(w1u.shape), resident_spec(w1i.shape), resident_spec(b1.shape),
        resident_spec(params["l2_w"].shape), resident_spec(b2.shape),
        resident_spec(params["l3_w"].shape), resident_spec(b3.shape),
        resident_spec(params["l4_w"].shape), resident_spec(b4.shape),
        resident_spec(hw_g.shape), resident_spec(hw_m.shape),
        pl.BlockSpec(memory_space=pltpu.MemorySpace.SMEM),   # scalar head bias
    ]

    out = pl.pallas_call(
        _ncf_kernel,
        grid=(grid_b,),
        in_specs=in_specs,
        out_specs=pl.BlockSpec((1, tb), lambda b: (0, b)),   # lane-dense output
        out_shape=jax.ShapeDtypeStruct((1, b_pad), jnp.float32),
        compiler_params=pltpu.CompilerParams(
            dimension_semantics=("parallel",)),              # megacore on v7x
    )(gmf_u, gmf_i, mlp_u, mlp_i,
      w1u, w1i, b1,
      params["l2_w"], b2,
      params["l3_w"], b3,
      params["l4_w"], b4,
      hw_g, hw_m, hb)

    return out.reshape(-1)[:B]                           # .view(-1) in torch


# ---------------------------------------------------------------------------
# Deterministic parameter construction (shapes mirror NCF.__init__)
# ---------------------------------------------------------------------------
def init_params(key, dim, n_items, n_users):
    ks = jax.random.split(key, 11)

    def linear(kw, kb, fan_in, fan_out):
        bound = 1.0 / jnp.sqrt(float(fan_in))
        w = jax.random.uniform(kw, (fan_in, fan_out), jnp.float32, -bound, bound)
        b = jax.random.uniform(kb, (fan_out,), jnp.float32, -bound, bound)
        return w, b

    def xavier_bf16(k, shape):
        bound = jnp.sqrt(6.0 / (shape[0] + shape[1]))
        # Embedding tables stored in bf16: halves HBM traffic on the dominant
        # (gather + kernel-read) term; cast back to f32 inside the kernel.
        w = jax.random.uniform(k, shape, jnp.float32, -bound, bound)
        return w.astype(jnp.bfloat16)

    l1_w, l1_b = linear(ks[0], ks[1], 2 * dim, 32)
    l2_w, l2_b = linear(ks[2], ks[3], 32, 16)
    l3_w, l3_b = linear(ks[4], ks[5], 16, 8)
    l4_w, l4_b = linear(ks[6], ks[7], 8, 8)
    h_w, h_b = linear(ks[8], ks[9], dim + 8, 1)

    kk = jax.random.split(ks[10], 4)
    return {
        "l1_w": l1_w, "l1_b": l1_b,
        "l2_w": l2_w, "l2_b": l2_b,
        "l3_w": l3_w, "l3_b": l3_b,
        "l4_w": l4_w, "l4_b": l4_b,
        "h_w": h_w, "h_b": h_b,
        "gmf_item_emb": xavier_bf16(kk[0], (n_items, dim)),
        "mlp_item_emb": xavier_bf16(kk[1], (n_items, dim)),
        "gmf_user_emb": xavier_bf16(kk[2], (n_users, dim)),
        "mlp_user_emb": xavier_bf16(kk[3], (n_users, dim)),
    }


# Pure-JAX reference for correctness checking (same bf16 rows cast to f32).
def ncf_reference(params, users_id, items_id):
    f32 = jnp.float32
    gmf_u = params["gmf_user_emb"][users_id].astype(f32)
    gmf_i = params["gmf_item_emb"][items_id].astype(f32)
    mlp_u = params["mlp_user_emb"][users_id].astype(f32)
    mlp_i = params["mlp_item_emb"][items_id].astype(f32)

    gmf = gmf_u * gmf_i
    x = jnp.concatenate([mlp_u, mlp_i], axis=1)
    y = jnp.maximum(x @ params["l1_w"] + params["l1_b"], 0.0)
    y = jnp.maximum(y @ params["l2_w"] + params["l2_b"], 0.0)
    y = jnp.maximum(y @ params["l3_w"] + params["l3_b"], 0.0)
    y = jnp.maximum(y @ params["l4_w"] + params["l4_b"], 0.0)
    cat = jnp.concatenate([gmf, y], axis=1)
    return jax.nn.sigmoid(cat @ params["h_w"] + params["h_b"]).reshape(-1)


if __name__ == "__main__":
    key = jax.random.PRNGKey(0)
    dim = 16
    n_items = 40
    n_users = 50
    batch = 300          # multi-tile + ragged last tile with TB=128

    k_param, k_u, k_i = jax.random.split(key, 3)
    params = init_params(k_param, dim, n_items, n_users)

    # "pairs" = list of (user_id, item_id); here as two int arrays.
    users_id = jax.random.randint(k_u, (batch,), 0, n_users)
    items_id = jax.random.randint(k_i, (batch,), 0, n_items)

    out = ncf_forward(params, users_id, items_id)
    out = jax.block_until_ready(out)

    ref = ncf_reference(params, users_id, items_id)
    assert out.shape == (batch,)
    assert jnp.allclose(out, ref, atol=5e-5, rtol=5e-5), (out, ref)

    print("KERNEL_OK")
</pallas_src>

<mosaic_0001>
module attributes {stable_mosaic.version = 11 : i64} {
  func.func @_ncf_kernel(%arg0: i32, %arg1: memref<128x16xbf16, #tpu.memory_space<vmem>>, %arg2: memref<128x16xbf16, #tpu.memory_space<vmem>>, %arg3: memref<128x16xbf16, #tpu.memory_space<vmem>>, %arg4: memref<128x16xbf16, #tpu.memory_space<vmem>>, %arg5: memref<16x32xf32, #tpu.memory_space<vmem>>, %arg6: memref<16x32xf32, #tpu.memory_space<vmem>>, %arg7: memref<1x32xf32, #tpu.memory_space<vmem>>, %arg8: memref<32x16xf32, #tpu.memory_space<vmem>>, %arg9: memref<1x16xf32, #tpu.memory_space<vmem>>, %arg10: memref<16x8xf32, #tpu.memory_space<vmem>>, %arg11: memref<1x8xf32, #tpu.memory_space<vmem>>, %arg12: memref<8x8xf32, #tpu.memory_space<vmem>>, %arg13: memref<1x8xf32, #tpu.memory_space<vmem>>, %arg14: memref<1x16xf32, #tpu.memory_space<vmem>>, %arg15: memref<1x8xf32, #tpu.memory_space<vmem>>, %arg16: memref<1xf32, #tpu.memory_space<smem>>, %arg17: memref<1x128xf32, #tpu.memory_space<vmem>>) attributes {dimension_semantics = [#tpu.dimension_semantics<parallel>], iteration_bounds = array<i64: 3>, scalar_prefetch = 0 : i64, scratch_operands = 0 : i64, tpu.core_type = #tpu.core_type<tc>, window_params = [{transform_indices = @transform_0, window_bounds = array<i64: 128, 16>}, {transform_indices = @transform_1, window_bounds = array<i64: 128, 16>}, {transform_indices = @transform_2, window_bounds = array<i64: 128, 16>}, {transform_indices = @transform_3, window_bounds = array<i64: 128, 16>}, {pipeline_mode = #tpu.pipeline_mode<synchronous>, transform_indices = @transform_4, window_bounds = array<i64: 16, 32>}, {pipeline_mode = #tpu.pipeline_mode<synchronous>, transform_indices = @transform_5, window_bounds = array<i64: 16, 32>}, {pipeline_mode = #tpu.pipeline_mode<synchronous>, transform_indices = @transform_6, window_bounds = array<i64: 1, 32>}, {pipeline_mode = #tpu.pipeline_mode<synchronous>, transform_indices = @transform_7, window_bounds = array<i64: 32, 16>}, {pipeline_mode = #tpu.pipeline_mode<synchronous>, transform_indices = @transform_8, window_bounds = array<i64: 1, 16>}, {pipeline_mode = #tpu.pipeline_mode<synchronous>, transform_indices = @transform_9, window_bounds = array<i64: 16, 8>}, {pipeline_mode = #tpu.pipeline_mode<synchronous>, transform_indices = @transform_10, window_bounds = array<i64: 1, 8>}, {pipeline_mode = #tpu.pipeline_mode<synchronous>, transform_indices = @transform_11, window_bounds = array<i64: 8, 8>}, {pipeline_mode = #tpu.pipeline_mode<synchronous>, transform_indices = @transform_12, window_bounds = array<i64: 1, 8>}, {pipeline_mode = #tpu.pipeline_mode<synchronous>, transform_indices = @transform_13, window_bounds = array<i64: 1, 16>}, {pipeline_mode = #tpu.pipeline_mode<synchronous>, transform_indices = @transform_14, window_bounds = array<i64: 1, 8>}, {transform_indices = @transform_15, window_bounds = array<i64: 1>}, {transform_indices = @transform_16, window_bounds = array<i64: 1, 128>}]} {
    %c0 = arith.constant 0 : index
    %c0_0 = arith.constant 0 : index
    %0 = vector.load %arg1[%c0, %c0_0] : memref<128x16xbf16, #tpu.memory_space<vmem>>, vector<128x16xbf16>
    %1 = arith.extf %0 : vector<128x16xbf16> to vector<128x16xf32>
    %c0_1 = arith.constant 0 : index
    %c0_2 = arith.constant 0 : index
    %2 = vector.load %arg2[%c0_1, %c0_2] : memref<128x16xbf16, #tpu.memory_space<vmem>>, vector<128x16xbf16>
    %3 = arith.extf %2 : vector<128x16xbf16> to vector<128x16xf32>
    %c0_3 = arith.constant 0 : index
    %c0_4 = arith.constant 0 : index
    %4 = vector.load %arg3[%c0_3, %c0_4] : memref<128x16xbf16, #tpu.memory_space<vmem>>, vector<128x16xbf16>
    %5 = arith.extf %4 : vector<128x16xbf16> to vector<128x16xf32>
    %c0_5 = arith.constant 0 : index
    %c0_6 = arith.constant 0 : index
    %6 = vector.load %arg4[%c0_5, %c0_6] : memref<128x16xbf16, #tpu.memory_space<vmem>>, vector<128x16xbf16>
    %7 = arith.extf %6 : vector<128x16xbf16> to vector<128x16xf32>
    %8 = arith.mulf %1, %3 : vector<128x16xf32>
    %c0_7 = arith.constant 0 : index
    %c0_8 = arith.constant 0 : index
    %9 = vector.load %arg5[%c0_7, %c0_8] : memref<16x32xf32, #tpu.memory_space<vmem>>, vector<16x32xf32>
    %cst = arith.constant dense<0.000000e+00> : vector<128x32xf32>
    %10 = tpu.matmul %5, %9, %cst {dimension_numbers = #tpu.dot_dimension_numbers<[1], [0], [0], [1], [0, 0, 1, 1], [], []>} : vector<128x16xf32>, vector<16x32xf32>, vector<128x32xf32> -> vector<128x32xf32>
    %c0_9 = arith.constant 0 : index
    %c0_10 = arith.constant 0 : index
    %11 = vector.load %arg6[%c0_9, %c0_10] : memref<16x32xf32, #tpu.memory_space<vmem>>, vector<16x32xf32>
    %cst_11 = arith.constant dense<0.000000e+00> : vector<128x32xf32>
    %12 = tpu.matmul %7, %11, %cst_11 {dimension_numbers = #tpu.dot_dimension_numbers<[1], [0], [0], [1], [0, 0, 1, 1], [], []>} : vector<128x16xf32>, vector<16x32xf32>, vector<128x32xf32> -> vector<128x32xf32>
    %13 = arith.addf %10, %12 : vector<128x32xf32>
    %c0_12 = arith.constant 0 : index
    %c0_13 = arith.constant 0 : index
    %14 = vector.load %arg7[%c0_12, %c0_13] : memref<1x32xf32, #tpu.memory_space<vmem>>, vector<1x32xf32>
    %15 = vector.broadcast %14 : vector<1x32xf32> to vector<128x32xf32>
    %16 = arith.addf %13, %15 : vector<128x32xf32>
    %cst_14 = arith.constant 0.000000e+00 : f32
    %17 = vector.broadcast %cst_14 : f32 to vector<128x32xf32>
    %18 = arith.maximumf %16, %17 : vector<128x32xf32>
    %c0_15 = arith.constant 0 : index
    %c0_16 = arith.constant 0 : index
    %19 = vector.load %arg8[%c0_15, %c0_16] : memref<32x16xf32, #tpu.memory_space<vmem>>, vector<32x16xf32>
    %cst_17 = arith.constant dense<0.000000e+00> : vector<128x16xf32>
    %20 = tpu.matmul %18, %19, %cst_17 {dimension_numbers = #tpu.dot_dimension_numbers<[1], [0], [0], [1], [0, 0, 1, 1], [], []>} : vector<128x32xf32>, vector<32x16xf32>, vector<128x16xf32> -> vector<128x16xf32>
    %c0_18 = arith.constant 0 : index
    %c0_19 = arith.constant 0 : index
    %21 = vector.load %arg9[%c0_18, %c0_19] : memref<1x16xf32, #tpu.memory_space<vmem>>, vector<1x16xf32>
    %22 = vector.broadcast %21 : vector<1x16xf32> to vector<128x16xf32>
    %23 = arith.addf %20, %22 : vector<128x16xf32>
    %cst_20 = arith.constant 0.000000e+00 : f32
    %24 = vector.broadcast %cst_20 : f32 to vector<128x16xf32>
    %25 = arith.maximumf %23, %24 : vector<128x16xf32>
    %c0_21 = arith.constant 0 : index
    %c0_22 = arith.constant 0 : index
    %26 = vector.load %arg10[%c0_21, %c0_22] : memref<16x8xf32, #tpu.memory_space<vmem>>, vector<16x8xf32>
    %cst_23 = arith.constant dense<0.000000e+00> : vector<128x8xf32>
    %27 = tpu.matmul %25, %26, %cst_23 {dimension_numbers = #tpu.dot_dimension_numbers<[1], [0], [0], [1], [0, 0, 1, 1], [], []>} : vector<128x16xf32>, vector<16x8xf32>, vector<128x8xf32> -> vector<128x8xf32>
    %c0_24 = arith.constant 0 : index
    %c0_25 = arith.constant 0 : index
    %28 = vector.load %arg11[%c0_24, %c0_25] : memref<1x8xf32, #tpu.memory_space<vmem>>, vector<1x8xf32>
    %29 = vector.broadcast %28 : vector<1x8xf32> to vector<128x8xf32>
    %30 = arith.addf %27, %29 : vector<128x8xf32>
    %cst_26 = arith.constant 0.000000e+00 : f32
    %31 = vector.broadcast %cst_26 : f32 to vector<128x8xf32>
    %32 = arith.maximumf %30, %31 : vector<128x8xf32>
    %c0_27 = arith.constant 0 : index
    %c0_28 = arith.constant 0 : index
    %33 = vector.load %arg12[%c0_27, %c0_28] : memref<8x8xf32, #tpu.memory_space<vmem>>, vector<8x8xf32>
    %cst_29 = arith.constant dense<0.000000e+00> : vector<128x8xf32>
    %34 = tpu.matmul %32, %33, %cst_29 {dimension_numbers = #tpu.dot_dimension_numbers<[1], [0], [0], [1], [0, 0, 1, 1], [], []>} : vector<128x8xf32>, vector<8x8xf32>, vector<128x8xf32> -> vector<128x8xf32>
    %c0_30 = arith.constant 0 : index
    %c0_31 = arith.constant 0 : index
    %35 = vector.load %arg13[%c0_30, %c0_31] : memref<1x8xf32, #tpu.memory_space<vmem>>, vector<1x8xf32>
    %36 = vector.broadcast %35 : vector<1x8xf32> to vector<128x8xf32>
    %37 = arith.addf %34, %36 : vector<128x8xf32>
    %cst_32 = arith.constant 0.000000e+00 : f32
    %38 = vector.broadcast %cst_32 : f32 to vector<128x8xf32>
    %39 = arith.maximumf %37, %38 : vector<128x8xf32>
    %c0_33 = arith.constant 0 : index
    %c0_34 = arith.constant 0 : index
    %40 = vector.load %arg14[%c0_33, %c0_34] : memref<1x16xf32, #tpu.memory_space<vmem>>, vector<1x16xf32>
    %cst_35 = arith.constant dense<0.000000e+00> : vector<1x128xf32>
    %41 = tpu.matmul %40, %8, %cst_35 {dimension_numbers = #tpu.dot_dimension_numbers<[1], [1], [0], [0], [0, 0, 1, 0], [], []>} : vector<1x16xf32>, vector<128x16xf32>, vector<1x128xf32> -> vector<1x128xf32>
    %c0_36 = arith.constant 0 : index
    %c0_37 = arith.constant 0 : index
    %42 = vector.load %arg15[%c0_36, %c0_37] : memref<1x8xf32, #tpu.memory_space<vmem>>, vector<1x8xf32>
    %cst_38 = arith.constant dense<0.000000e+00> : vector<1x128xf32>
    %43 = tpu.matmul %42, %39, %cst_38 {dimension_numbers = #tpu.dot_dimension_numbers<[1], [1], [0], [0], [0, 0, 1, 0], [], []>} : vector<1x8xf32>, vector<128x8xf32>, vector<1x128xf32> -> vector<1x128xf32>
    %44 = arith.addf %41, %43 : vector<1x128xf32>
    %c0_39 = arith.constant 0 : index
    %45 = memref.load %arg16[%c0_39] : memref<1xf32, #tpu.memory_space<smem>>
    %46 = vector.broadcast %45 : f32 to vector<1x128xf32>
    %47 = arith.addf %44, %46 : vector<1x128xf32>
    %48 = arith.negf %47 : vector<1x128xf32>
    %49 = math.exp %48 : vector<1x128xf32>
    %cst_40 = arith.constant 1.000000e+00 : f32
    %50 = vector.broadcast %cst_40 : f32 to vector<1x128xf32>
    %51 = arith.addf %50, %49 : vector<1x128xf32>
    %52 = arith.divf %50, %51 : vector<1x128xf32>
    %c0_41 = arith.constant 0 : index
    %c0_42 = arith.constant 0 : index
    %53 = vector.load %arg17[%c0_41, %c0_42] : memref<1x128xf32, #tpu.memory_space<vmem>>, vector<1x128xf32>
    tpu.vector_store %arg17[%c0_41, %c0_42], %52 {strides = array<i32>} : memref<1x128xf32, #tpu.memory_space<vmem>>, vector<1x128xf32>,
    return
  }
  func.func @transform_0(%arg0: i32) -> (i32, i32) {
    %c0_i32 = arith.constant 0 : i32
    %c0_i32_0 = arith.constant 0 : i32
    return %arg0, %c0_i32 : i32, i32
  }
  func.func @transform_1(%arg0: i32) -> (i32, i32) {
    %c0_i32 = arith.constant 0 : i32
    %c0_i32_0 = arith.constant 0 : i32
    return %arg0, %c0_i32 : i32, i32
  }
  func.func @transform_2(%arg0: i32) -> (i32, i32) {
    %c0_i32 = arith.constant 0 : i32
    %c0_i32_0 = arith.constant 0 : i32
    return %arg0, %c0_i32 : i32, i32
  }
  func.func @transform_3(%arg0: i32) -> (i32, i32) {
    %c0_i32 = arith.constant 0 : i32
    %c0_i32_0 = arith.constant 0 : i32
    return %arg0, %c0_i32 : i32, i32
  }
  func.func @transform_4(%arg0: i32) -> (i32, i32) {
    %c0_i32 = arith.constant 0 : i32
    %c0_i32_0 = arith.constant 0 : i32
    %c0_i32_1 = arith.constant 0 : i32
    return %c0_i32, %c0_i32_0 : i32, i32
  }
  func.func @transform_5(%arg0: i32) -> (i32, i32) {
    %c0_i32 = arith.constant 0 : i32
    %c0_i32_0 = arith.constant 0 : i32
    %c0_i32_1 = arith.constant 0 : i32
    return %c0_i32, %c0_i32_0 : i32, i32
  }
  func.func @transform_6(%arg0: i32) -> (i32, i32) {
    %c0_i32 = arith.constant 0 : i32
    %c0_i32_0 = arith.constant 0 : i32
    %c0_i32_1 = arith.constant 0 : i32
    return %c0_i32, %c0_i32_0 : i32, i32
  }
  func.func @transform_7(%arg0: i32) -> (i32, i32) {
    %c0_i32 = arith.constant 0 : i32
    %c0_i32_0 = arith.constant 0 : i32
    %c0_i32_1 = arith.constant 0 : i32
    return %c0_i32, %c0_i32_0 : i32, i32
  }
  func.func @transform_8(%arg0: i32) -> (i32, i32) {
    %c0_i32 = arith.constant 0 : i32
    %c0_i32_0 = arith.constant 0 : i32
    %c0_i32_1 = arith.constant 0 : i32
    return %c0_i32, %c0_i32_0 : i32, i32
  }
  func.func @transform_9(%arg0: i32) -> (i32, i32) {
    %c0_i32 = arith.constant 0 : i32
    %c0_i32_0 = arith.constant 0 : i32
    %c0_i32_1 = arith.constant 0 : i32
    return %c0_i32, %c0_i32_0 : i32, i32
  }
  func.func @transform_10(%arg0: i32) -> (i32, i32) {
    %c0_i32 = arith.constant 0 : i32
    %c0_i32_0 = arith.constant 0 : i32
    %c0_i32_1 = arith.constant 0 : i32
    return %c0_i32, %c0_i32_0 : i32, i32
  }
  func.func @transform_11(%arg0: i32) -> (i32, i32) {
    %c0_i32 = arith.constant 0 : i32
    %c0_i32_0 = arith.constant 0 : i32
    %c0_i32_1 = arith.constant 0 : i32
    return %c0_i32, %c0_i32_0 : i32, i32
  }
  func.func @transform_12(%arg0: i32) -> (i32, i32) {
    %c0_i32 = arith.constant 0 : i32
    %c0_i32_0 = arith.constant 0 : i32
    %c0_i32_1 = arith.constant 0 : i32
    return %c0_i32, %c0_i32_0 : i32, i32
  }
  func.func @transform_13(%arg0: i32) -> (i32, i32) {
    %c0_i32 = arith.constant 0 : i32
    %c0_i32_0 = arith.constant 0 : i32
    %c0_i32_1 = arith.constant 0 : i32
    return %c0_i32, %c0_i32_0 : i32, i32
  }
  func.func @transform_14(%arg0: i32) -> (i32, i32) {
    %c0_i32 = arith.constant 0 : i32
    %c0_i32_0 = arith.constant 0 : i32
    %c0_i32_1 = arith.constant 0 : i32
    return %c0_i32, %c0_i32_0 : i32, i32
  }
  func.func @transform_15(%arg0: i32) -> i32 {
    %c0_i32 = arith.constant 0 : i32
    %c0_i32_0 = arith.constant 0 : i32
    return %c0_i32 : i32
  }
  func.func @transform_16(%arg0: i32) -> (i32, i32) {
    %c0_i32 = arith.constant 0 : i32
    %c0_i32_0 = arith.constant 0 : i32
    return %c0_i32, %arg0 : i32, i32
  }
}

</mosaic_0001>

<llo_original>
// kernel: ncf_forward.1
$region0: #{ncf_forward.1}
  #allocation0 [shape = 'u32[]', space=smem, size = 0x4, offset = 0x4, fixed_abs, tag = 'smem constant byte address 0x4 - core index']
  #allocation1 [shape = 'u32[144,128]{1,0:T(1,128)}', space=vmem, size = 0x12000, scoped, tag = 'internal scratch']
  #allocation2 [shape = 'f32[1]{0:T(128)S(6)}', space=smem, size = 0x200, scoped, tag = 'scoped memory for ncf_forward.1']
  %s0 = inlined_call_operand.vmem [shape: bf16[384,16], index: 0, kind: input, shape index: {}]
  %s1 = inlined_call_operand.vmem [shape: bf16[384,16], index: 1, kind: input, shape index: {}]
  %s2 = inlined_call_operand.vmem [shape: bf16[384,16], index: 2, kind: input, shape index: {}]
  %s3 = inlined_call_operand.vmem [shape: bf16[384,16], index: 3, kind: input, shape index: {}]
  %s4 = inlined_call_operand.vmem [shape: f32[16,32], index: 4, kind: input, shape index: {}]
  %s5 = inlined_call_operand.vmem [shape: f32[16,32], index: 5, kind: input, shape index: {}]
  %s6 = inlined_call_operand.vmem [shape: f32[1,32], index: 6, kind: input, shape index: {}]
  %s7 = inlined_call_operand.vmem [shape: f32[32,16], index: 7, kind: input, shape index: {}]
  %s8 = inlined_call_operand.vmem [shape: f32[1,16], index: 8, kind: input, shape index: {}]
  %s9 = inlined_call_operand.vmem [shape: f32[16,8], index: 9, kind: input, shape index: {}]
  %s10 = inlined_call_operand.vmem [shape: f32[1,8], index: 10, kind: input, shape index: {}]
  %s11 = inlined_call_operand.vmem [shape: f32[8,8], index: 11, kind: input, shape index: {}]
  %s12 = inlined_call_operand.vmem [shape: f32[1,8], index: 12, kind: input, shape index: {}]
  %s13 = inlined_call_operand.vmem [shape: f32[1,16], index: 13, kind: input, shape index: {}]
  %s14 = inlined_call_operand.vmem [shape: f32[1,8], index: 14, kind: input, shape index: {}]
  %s15 = inlined_call_operand.<no memory space> [shape: f32[1], index: 15, kind: input, shape index: {}]
  %s16 = inlined_call_operand.vmem [shape: f32[1,384], index: 16, kind: output, shape index: {}]
  %s17 = sld [smem:[#allocation0]]
  $region97: #{ncf_forward.1} parent=0
    _
  %s19 = ssub.s32 1, %s17
  %s20 = scalar_select 0, %s19, %s17
  %21 = sst [smem:[#allocation2]] %s15
  loop: start=0, step=1, limit=5
  $region2: #{ncf_forward.1} parent=0 // loop_pre_header
    _
  $region3: #{ncf_forward.1} parent=0 // loop_header
    %s23 = sphi 0, %s27
    %p24 = scmp.ge.s32.totalorder %s23, 5
    %s33 = sphi 0, %s35
    %s36 = sphi 0, %s33
    %s37 = sphi 0, %s36
    %s53 = sphi 0, %s37
    %s59 = sphi 0, %s61
    %s62 = sphi 0, %s59
    %s63 = sphi 0, %s62
    %s79 = sphi 0, %s63
    %s85 = sphi 0, %s87
    %s88 = sphi 0, %s85
    %s89 = sphi 0, %s88
    %s105 = sphi 0, %s89
    %s111 = sphi 0, %s113
    %s114 = sphi 0, %s111
    %s115 = sphi 0, %s114
    %s131 = sphi 0, %s115
    %s135 = sphi 0, %s135
    %s137 = sphi 0, %s135
    %s138 = sphi 0, %s137
    %s152 = sphi 0, %s138
    %s156 = sphi 0, %s156
    %s158 = sphi 0, %s156
    %s159 = sphi 0, %s158
    %s173 = sphi 0, %s159
    %s177 = sphi 0, %s177
    %s179 = sphi 0, %s177
    %s180 = sphi 0, %s179
    %s194 = sphi 0, %s180
    %s198 = sphi 0, %s198
    %s200 = sphi 0, %s198
    %s201 = sphi 0, %s200
    %s215 = sphi 0, %s201
    %s219 = sphi 0, %s219
    %s221 = sphi 0, %s219
    %s222 = sphi 0, %s221
    %s236 = sphi 0, %s222
    %s240 = sphi 0, %s240
    %s242 = sphi 0, %s240
    %s243 = sphi 0, %s242
    %s257 = sphi 0, %s243
    %s261 = sphi 0, %s261
    %s263 = sphi 0, %s261
    %s264 = sphi 0, %s263
    %s278 = sphi 0, %s264
    %s282 = sphi 0, %s282
    %s284 = sphi 0, %s282
    %s285 = sphi 0, %s284
    %s299 = sphi 0, %s285
    %s303 = sphi 0, %s303
    %s305 = sphi 0, %s303
    %s306 = sphi 0, %s305
    %s320 = sphi 0, %s306
    %s324 = sphi 0, %s324
    %s326 = sphi 0, %s324
    %s327 = sphi 0, %s326
    %s341 = sphi 0, %s327
    %s345 = sphi 0, %s345
    %s347 = sphi 0, %s345
    %s348 = sphi 0, %s347
    %s362 = sphi 0, %s348
    %s366 = sphi 0, %s366
    %s368 = sphi 0, %s366
    %s369 = sphi 0, %s368
    %s383 = sphi 0, %s369
    %s389 = sphi 0, %s391
    %s392 = sphi 0, %s389
    %s393 = sphi 0, %s392
    %s409 = sphi 0, %s393
  $region4: #{ncf_forward.1} parent=0 // loop_header_branch
    %26 = sbr.rel (%p24) target = $region8
  $region5: #{ncf_forward.1} parent=0 // loop_body
    %s28 = ssub.s32 %s23, 1
    %s29 = ssub.s32 %s23, 2
    %s30 = sadd.s32 %s23, 1
    %s31 = ssub.s32 %s23, %s30
    %p32 = scmp.eq.s32.totalorder %s31, 0
    %s34 = sadd.s32 %s33, 1
    %s35 = scalar_select %p32, %s33, %s34
    %p38 = pneg %p32
    %p39 = scmp.eq.s32.totalorder %s23, 2
    %p40 = por %p38, %p39
    %p41 = scmp.ne.s32.totalorder %s33, %s36
    %p42 = scmp.eq.s32.totalorder %s23, 0
    %p43 = por %p41, %p42
    %p44 = scmp.ne.s32.totalorder %s33, %s36
    %p45 = scmp.eq.s32.totalorder %s28, 2
    %p46 = por %p44, %p45
    %p47 = scmp.ne.s32.totalorder %s36, %s37
    %p48 = scmp.eq.s32.totalorder %s28, 0
    %p49 = por %p47, %p48
    %p50 = scmp.ne.s32.totalorder %s36, %s37
    %p51 = scmp.eq.s32.totalorder %s29, 2
    %p52 = por %p50, %p51
    %p54 = scmp.ne.s32.totalorder %s37, %s53
    %p55 = scmp.eq.s32.totalorder %s29, 0
    %p56 = por %p54, %p55
    %s57 = ssub.s32 %s23, %s30
    %p58 = scmp.eq.s32.totalorder %s57, 0
    %s60 = sadd.s32 %s59, 1
    %s61 = scalar_select %p58, %s59, %s60
    %p64 = pneg %p58
    %p65 = scmp.eq.s32.totalorder %s23, 2
    %p66 = por %p64, %p65
    %p67 = scmp.ne.s32.totalorder %s59, %s62
    %p68 = scmp.eq.s32.totalorder %s23, 0
    %p69 = por %p67, %p68
    %p70 = scmp.ne.s32.totalorder %s59, %s62
    %p71 = scmp.eq.s32.totalorder %s28, 2
    %p72 = por %p70, %p71
    %p73 = scmp.ne.s32.totalorder %s62, %s63
    %p74 = scmp.eq.s32.totalorder %s28, 0
    %p75 = por %p73, %p74
    %p76 = scmp.ne.s32.totalorder %s62, %s63
    %p77 = scmp.eq.s32.totalorder %s29, 2
    %p78 = por %p76, %p77
    %p80 = scmp.ne.s32.totalorder %s63, %s79
    %p81 = scmp.eq.s32.totalorder %s29, 0
    %p82 = por %p80, %p81
    %s83 = ssub.s32 %s23, %s30
    %p84 = scmp.eq.s32.totalorder %s83, 0
    %s86 = sadd.s32 %s85, 1
    %s87 = scalar_select %p84, %s85, %s86
    %p90 = pneg %p84
    %p91 = scmp.eq.s32.totalorder %s23, 2
    %p92 = por %p90, %p91
    %p93 = scmp.ne.s32.totalorder %s85, %s88
    %p94 = scmp.eq.s32.totalorder %s23, 0
    %p95 = por %p93, %p94
    %p96 = scmp.ne.s32.totalorder %s85, %s88
    %p97 = scmp.eq.s32.totalorder %s28, 2
    %p98 = por %p96, %p97
    %p99 = scmp.ne.s32.totalorder %s88, %s89
    %p100 = scmp.eq.s32.totalorder %s28, 0
    %p101 = por %p99, %p100
    %p102 = scmp.ne.s32.totalorder %s88, %s89
    %p103 = scmp.eq.s32.totalorder %s29, 2
    %p104 = por %p102, %p103
    %p106 = scmp.ne.s32.totalorder %s89, %s105
    %p107 = scmp.eq.s32.totalorder %s29, 0
    %p108 = por %p106, %p107
    %s109 = ssub.s32 %s23, %s30
    %p110 = scmp.eq.s32.totalorder %s109, 0
    %s112 = sadd.s32 %s111, 1
    %s113 = scalar_select %p110, %s111, %s112
    %p116 = pneg %p110
    %p117 = scmp.eq.s32.totalorder %s23, 2
    %p118 = por %p116, %p117
    %p119 = scmp.ne.s32.totalorder %s111, %s114
    %p120 = scmp.eq.s32.totalorder %s23, 0
    %p121 = por %p119, %p120
    %p122 = scmp.ne.s32.totalorder %s111, %s114
    %p123 = scmp.eq.s32.totalorder %s28, 2
    %p124 = por %p122, %p123
    %p125 = scmp.ne.s32.totalorder %s114, %s115
    %p126 = scmp.eq.s32.totalorder %s28, 0
    %p127 = por %p125, %p126
    %p128 = scmp.ne.s32.totalorder %s114, %s115
    %p129 = scmp.eq.s32.totalorder %s29, 2
    %p130 = por %p128, %p129
    %p132 = scmp.ne.s32.totalorder %s115, %s131
    %p133 = scmp.eq.s32.totalorder %s29, 0
    %p134 = por %p132, %p133
    %s136 = sadd.s32 %s135, 1
    %p139 = scmp.eq.s32.totalorder %s23, 2
    %p140 = scmp.ne.s32.totalorder %s135, %s137
    %p141 = scmp.eq.s32.totalorder %s23, 0
    %p142 = por %p140, %p141
    %p143 = scmp.ne.s32.totalorder %s135, %s137
    %p144 = scmp.eq.s32.totalorder %s28, 2
    %p145 = por %p143, %p144
    %p146 = scmp.ne.s32.totalorder %s137, %s138
    %p147 = scmp.eq.s32.totalorder %s28, 0
    %p148 = por %p146, %p147
    %p149 = scmp.ne.s32.totalorder %s137, %s138
    %p150 = scmp.eq.s32.totalorder %s29, 2
    %p151 = por %p149, %p150
    %p153 = scmp.ne.s32.totalorder %s138, %s152
    %p154 = scmp.eq.s32.totalorder %s29, 0
    %p155 = por %p153, %p154
    %s157 = sadd.s32 %s156, 1
    %p160 = scmp.eq.s32.totalorder %s23, 2
    %p161 = scmp.ne.s32.totalorder %s156, %s158
    %p162 = scmp.eq.s32.totalorder %s23, 0
    %p163 = por %p161, %p162
    %p164 = scmp.ne.s32.totalorder %s156, %s158
    %p165 = scmp.eq.s32.totalorder %s28, 2
    %p166 = por %p164, %p165
    %p167 = scmp.ne.s32.totalorder %s158, %s159
    %p168 = scmp.eq.s32.totalorder %s28, 0
    %p169 = por %p167, %p168
    %p170 = scmp.ne.s32.totalorder %s158, %s159
    %p171 = scmp.eq.s32.totalorder %s29, 2
    %p172 = por %p170, %p171
    %p174 = scmp.ne.s32.totalorder %s159, %s173
    %p175 = scmp.eq.s32.totalorder %s29, 0
    %p176 = por %p174, %p175
    %s178 = sadd.s32 %s177, 1
    %p181 = scmp.eq.s32.totalorder %s23, 2
    %p182 = scmp.ne.s32.totalorder %s177, %s179
    %p183 = scmp.eq.s32.totalorder %s23, 0
    %p184 = por %p182, %p183
    %p185 = scmp.ne.s32.totalorder %s177, %s179
    %p186 = scmp.eq.s32.totalorder %s28, 2
    %p187 = por %p185, %p186
    %p188 = scmp.ne.s32.totalorder %s179, %s180
    %p189 = scmp.eq.s32.totalorder %s28, 0
    %p190 = por %p188, %p189
    %p191 = scmp.ne.s32.totalorder %s179, %s180
    %p192 = scmp.eq.s32.totalorder %s29, 2
    %p193 = por %p191, %p192
    %p195 = scmp.ne.s32.totalorder %s180, %s194
    %p196 = scmp.eq.s32.totalorder %s29, 0
    %p197 = por %p195, %p196
    %s199 = sadd.s32 %s198, 1
    %p202 = scmp.eq.s32.totalorder %s23, 2
    %p203 = scmp.ne.s32.totalorder %s198, %s200
    %p204 = scmp.eq.s32.totalorder %s23, 0
    %p205 = por %p203, %p204
    %p206 = scmp.ne.s32.totalorder %s198, %s200
    %p207 = scmp.eq.s32.totalorder %s28, 2
    %p208 = por %p206, %p207
    %p209 = scmp.ne.s32.totalorder %s200, %s201
    %p210 = scmp.eq.s32.totalorder %s28, 0
    %p211 = por %p209, %p210
    %p212 = scmp.ne.s32.totalorder %s200, %s201
    %p213 = scmp.eq.s32.totalorder %s29, 2
    %p214 = por %p212, %p213
    %p216 = scmp.ne.s32.totalorder %s201, %s215
    %p217 = scmp.eq.s32.totalorder %s29, 0
    %p218 = por %p216, %p217
    %s220 = sadd.s32 %s219, 1
    %p223 = scmp.eq.s32.totalorder %s23, 2
    %p224 = scmp.ne.s32.totalorder %s219, %s221
    %p225 = scmp.eq.s32.totalorder %s23, 0
    %p226 = por %p224, %p225
    %p227 = scmp.ne.s32.totalorder %s219, %s221
    %p228 = scmp.eq.s32.totalorder %s28, 2
    %p229 = por %p227, %p228
    %p230 = scmp.ne.s32.totalorder %s221, %s222
    %p231 = scmp.eq.s32.totalorder %s28, 0
    %p232 = por %p230, %p231
    %p233 = scmp.ne.s32.totalorder %s221, %s222
    %p234 = scmp.eq.s32.totalorder %s29, 2
    %p235 = por %p233, %p234
    %p237 = scmp.ne.s32.totalorder %s222, %s236
    %p238 = scmp.eq.s32.totalorder %s29, 0
    %p239 = por %p237, %p238
    %s241 = sadd.s32 %s240, 1
    %p244 = scmp.eq.s32.totalorder %s23, 2
    %p245 = scmp.ne.s32.totalorder %s240, %s242
    %p246 = scmp.eq.s32.totalorder %s23, 0
    %p247 = por %p245, %p246
    %p248 = scmp.ne.s32.totalorder %s240, %s242
    %p249 = scmp.eq.s32.totalorder %s28, 2
    %p250 = por %p248, %p249
    %p251 = scmp.ne.s32.totalorder %s242, %s243
    %p252 = scmp.eq.s32.totalorder %s28, 0
    %p253 = por %p251, %p252
    %p254 = scmp.ne.s32.totalorder %s242, %s243
    %p255 = scmp.eq.s32.totalorder %s29, 2
    %p256 = por %p254, %p255
    %p258 = scmp.ne.s32.totalorder %s243, %s257
    %p259 = scmp.eq.s32.totalorder %s29, 0
    %p260 = por %p258, %p259
    %s262 = sadd.s32 %s261, 1
    %p265 = scmp.eq.s32.totalorder %s23, 2
    %p266 = scmp.ne.s32.totalorder %s261, %s263
    %p267 = scmp.eq.s32.totalorder %s23, 0
    %p268 = por %p266, %p267
    %p269 = scmp.ne.s32.totalorder %s261, %s263
    %p270 = scmp.eq.s32.totalorder %s28, 2
    %p271 = por %p269, %p270
    %p272 = scmp.ne.s32.totalorder %s263, %s264
    %p273 = scmp.eq.s32.totalorder %s28, 0
    %p274 = por %p272, %p273
    %p275 = scmp.ne.s32.totalorder %s263, %s264
    %p276 = scmp.eq.s32.totalorder %s29, 2
    %p277 = por %p275, %p276
    %p279 = scmp.ne.s32.totalorder %s264, %s278
    %p280 = scmp.eq.s32.totalorder %s29, 0
    %p281 = por %p279, %p280
    %s283 = sadd.s32 %s282, 1
    %p286 = scmp.eq.s32.totalorder %s23, 2
    %p287 = scmp.ne.s32.totalorder %s282, %s284
    %p288 = scmp.eq.s32.totalorder %s23, 0
    %p289 = por %p287, %p288
    %p290 = scmp.ne.s32.totalorder %s282, %s284
    %p291 = scmp.eq.s32.totalorder %s28, 2
    %p292 = por %p290, %p291
    %p293 = scmp.ne.s32.totalorder %s284, %s285
    %p294 = scmp.eq.s32.totalorder %s28, 0
    %p295 = por %p293, %p294
    %p296 = scmp.ne.s32.totalorder %s284, %s285
    %p297 = scmp.eq.s32.totalorder %s29, 2
    %p298 = por %p296, %p297
    %p300 = scmp.ne.s32.totalorder %s285, %s299
    %p301 = scmp.eq.s32.totalorder %s29, 0
    %p302 = por %p300, %p301
    %s304 = sadd.s32 %s303, 1
    %p307 = scmp.eq.s32.totalorder %s23, 2
    %p308 = scmp.ne.s32.totalorder %s303, %s305
    %p309 = scmp.eq.s32.totalorder %s23, 0
    %p310 = por %p308, %p309
    %p311 = scmp.ne.s32.totalorder %s303, %s305
    %p312 = scmp.eq.s32.totalorder %s28, 2
    %p313 = por %p311, %p312
    %p314 = scmp.ne.s32.totalorder %s305, %s306
    %p315 = scmp.eq.s32.totalorder %s28, 0
    %p316 = por %p314, %p315
    %p317 = scmp.ne.s32.totalorder %s305, %s306
    %p318 = scmp.eq.s32.totalorder %s29, 2
    %p319 = por %p317, %p318
    %p321 = scmp.ne.s32.totalorder %s306, %s320
    %p322 = scmp.eq.s32.totalorder %s29, 0
    %p323 = por %p321, %p322
    %s325 = sadd.s32 %s324, 1
    %p328 = scmp.eq.s32.totalorder %s23, 2
    %p329 = scmp.ne.s32.totalorder %s324, %s326
    %p330 = scmp.eq.s32.totalorder %s23, 0
    %p331 = por %p329, %p330
    %p332 = scmp.ne.s32.totalorder %s324, %s326
    %p333 = scmp.eq.s32.totalorder %s28, 2
    %p334 = por %p332, %p333
    %p335 = scmp.ne.s32.totalorder %s326, %s327
    %p336 = scmp.eq.s32.totalorder %s28, 0
    %p337 = por %p335, %p336
    %p338 = scmp.ne.s32.totalorder %s326, %s327
    %p339 = scmp.eq.s32.totalorder %s29, 2
    %p340 = por %p338, %p339
    %p342 = scmp.ne.s32.totalorder %s327, %s341
    %p343 = scmp.eq.s32.totalorder %s29, 0
    %p344 = por %p342, %p343
    %s346 = sadd.s32 %s345, 1
    %p349 = scmp.eq.s32.totalorder %s23, 2
    %p350 = scmp.ne.s32.totalorder %s345, %s347
    %p351 = scmp.eq.s32.totalorder %s23, 0
    %p352 = por %p350, %p351
    %p353 = scmp.ne.s32.totalorder %s345, %s347
    %p354 = scmp.eq.s32.totalorder %s28, 2
    %p355 = por %p353, %p354
    %p356 = scmp.ne.s32.totalorder %s347, %s348
    %p357 = scmp.eq.s32.totalorder %s28, 0
    %p358 = por %p356, %p357
    %p359 = scmp.ne.s32.totalorder %s347, %s348
    %p360 = scmp.eq.s32.totalorder %s29, 2
    %p361 = por %p359, %p360
    %p363 = scmp.ne.s32.totalorder %s348, %s362
    %p364 = scmp.eq.s32.totalorder %s29, 0
    %p365 = por %p363, %p364
    %s367 = sadd.s32 %s366, 1
    %p370 = scmp.eq.s32.totalorder %s23, 2
    %p371 = scmp.ne.s32.totalorder %s366, %s368
    %p372 = scmp.eq.s32.totalorder %s23, 0
    %p373 = por %p371, %p372
    %p374 = scmp.ne.s32.totalorder %s366, %s368
    %p375 = scmp.eq.s32.totalorder %s28, 2
    %p376 = por %p374, %p375
    %p377 = scmp.ne.s32.totalorder %s368, %s369
    %p378 = scmp.eq.s32.totalorder %s28, 0
    %p379 = por %p377, %p378
    %p380 = scmp.ne.s32.totalorder %s368, %s369
    %p381 = scmp.eq.s32.totalorder %s29, 2
    %p382 = por %p380, %p381
    %p384 = scmp.ne.s32.totalorder %s369, %s383
    %p385 = scmp.eq.s32.totalorder %s29, 0
    %p386 = por %p384, %p385
    %s387 = ssub.s32 %s23, %s30
    %p388 = scmp.eq.s32.totalorder %s387, 0
    %s390 = sadd.s32 %s389, 1
    %s391 = scalar_select %p388, %s389, %s390
    %p394 = pneg %p388
    %p395 = scmp.eq.s32.totalorder %s23, 2
    %p396 = por %p394, %p395
    %p397 = scmp.ne.s32.totalorder %s389, %s392
    %p398 = scmp.eq.s32.totalorder %s23, 0
    %p399 = por %p397, %p398
    %p400 = scmp.ne.s32.totalorder %s389, %s392
    %p401 = scmp.eq.s32.totalorder %s28, 2
    %p402 = por %p400, %p401
    %p403 = scmp.ne.s32.totalorder %s392, %s393
    %p404 = scmp.eq.s32.totalorder %s28, 0
    %p405 = por %p403, %p404
    %p406 = scmp.ne.s32.totalorder %s392, %s393
    %p407 = scmp.eq.s32.totalorder %s29, 2
    %p408 = por %p406, %p407
    %p410 = scmp.ne.s32.totalorder %s393, %s409
    %p411 = scmp.eq.s32.totalorder %s29, 0
    %p412 = por %p410, %p411
    %p413 = scmp.le.s32.totalorder 1, %s23
    %p414 = scmp.lt.s32.totalorder %s23, 4
    %p415 = pnand %p413, %p414
    %p416 = pneg %p415
    // Predicated region
    $region9: #{ncf_forward.1} parent=5 // pred_check
      _
    $region10: #{ncf_forward.1} parent=5 // pred_check_branch
      %418 = sbr.rel (%p415) target = $region12
    $region11: #{ncf_forward.1} parent=5 // pred_region
      %s419 = ssub.s32 %s23, 1
      // Predicated region
      $region13: #{ncf_forward.1} parent=11 // pred_check
        %p420 = pneg %p148
      $region14: #{ncf_forward.1} parent=11 // pred_check_branch
        %422 = sbr.rel (%p420) target = $region16
      $region15: #{ncf_forward.1} parent=11 // pred_region
        _
      $region16: #{ncf_forward.1} parent=11 // pred_fallthru
        _
      // Predicated region
      $region17: #{ncf_forward.1} parent=11 // pred_check
        %p423 = pneg %p169
      $region18: #{ncf_forward.1} parent=11 // pred_check_branch
        %425 = sbr.rel (%p423) target = $region20
      $region19: #{ncf_forward.1} parent=11 // pred_region
        _
      $region20: #{ncf_forward.1} parent=11 // pred_fallthru
        _
      // Predicated region
      $region21: #{ncf_forward.1} parent=11 // pred_check
        %p426 = pneg %p190
      $region22: #{ncf_forward.1} parent=11 // pred_check_branch
        %428 = sbr.rel (%p426) target = $region24
      $region23: #{ncf_forward.1} parent=11 // pred_region
        _
      $region24: #{ncf_forward.1} parent=11 // pred_fallthru
        _
      // Predicated region
      $region25: #{ncf_forward.1} parent=11 // pred_check
        %p429 = pneg %p211
      $region26: #{ncf_forward.1} parent=11 // pred_check_branch
        %431 = sbr.rel (%p429) target = $region28
      $region27: #{ncf_forward.1} parent=11 // pred_region
        _
      $region28: #{ncf_forward.1} parent=11 // pred_fallthru
        _
      // Predicated region
      $region29: #{ncf_forward.1} parent=11 // pred_check
        %p432 = pneg %p232
      $region30: #{ncf_forward.1} parent=11 // pred_check_branch
        %434 = sbr.rel (%p432) target = $region32
      $region31: #{ncf_forward.1} parent=11 // pred_region
        _
      $region32: #{ncf_forward.1} parent=11 // pred_fallthru
        _
      // Predicated region
      $region33: #{ncf_forward.1} parent=11 // pred_check
        %p435 = pneg %p253
      $region34: #{ncf_forward.1} parent=11 // pred_check_branch
        %437 = sbr.rel (%p435) target = $region36
      $region35: #{ncf_forward.1} parent=11 // pred_region
        _
      $region36: #{ncf_forward.1} parent=11 // pred_fallthru
        _
      // Predicated region
      $region37: #{ncf_forward.1} parent=11 // pred_check
        %p438 = pneg %p274
      $region38: #{ncf_forward.1} parent=11 // pred_check_branch
        %440 = sbr.rel (%p438) target = $region40
      $region39: #{ncf_forward.1} parent=11 // pred_region
        _
      $region40: #{ncf_forward.1} parent=11 // pred_fallthru
        _
      // Predicated region
      $region41: #{ncf_forward.1} parent=11 // pred_check
        %p441 = pneg %p295
      $region42: #{ncf_forward.1} parent=11 // pred_check_branch
        %443 = sbr.rel (%p441) target = $region44
      $region43: #{ncf_forward.1} parent=11 // pred_region
        _
      $region44: #{ncf_forward.1} parent=11 // pred_fallthru
        _
      // Predicated region
      $region45: #{ncf_forward.1} parent=11 // pred_check
        %p444 = pneg %p316
      $region46: #{ncf_forward.1} parent=11 // pred_check_branch
        %446 = sbr.rel (%p444) target = $region48
      $region47: #{ncf_forward.1} parent=11 // pred_region
        _
      $region48: #{ncf_forward.1} parent=11 // pred_fallthru
        _
      // Predicated region
      $region49: #{ncf_forward.1} parent=11 // pred_check
        %p447 = pneg %p337
      $region50: #{ncf_forward.1} parent=11 // pred_check_branch
        %449 = sbr.rel (%p447) target = $region52
      $region51: #{ncf_forward.1} parent=11 // pred_region
        _
      $region52: #{ncf_forward.1} parent=11 // pred_fallthru
        _
      // Predicated region
      $region53: #{ncf_forward.1} parent=11 // pred_check
        %p450 = pneg %p358
      $region54: #{ncf_forward.1} parent=11 // pred_check_branch
        %452 = sbr.rel (%p450) target = $region56
      $region55: #{ncf_forward.1} parent=11 // pred_region
        _
      $region56: #{ncf_forward.1} parent=11 // pred_fallthru
        _
      // Predicated region
      $region57: #{ncf_forward.1} parent=11 // pred_check
        %p453 = pneg %p379
      $region58: #{ncf_forward.1} parent=11 // pred_check_branch
        %455 = sbr.rel (%p453) target = $region60
      $region59: #{ncf_forward.1} parent=11 // pred_region
        _
      $region60: #{ncf_forward.1} parent=11 // pred_fallthru
        _
    $region12: #{ncf_forward.1} parent=5 // pred_fallthru
      _
    %p456 = scmp.lt.s32.totalorder %s23, 3
    // Predicated region
    $region61: #{ncf_forward.1} parent=5 // pred_check
      %p457 = pneg %p456
    $region62: #{ncf_forward.1} parent=5 // pred_check_branch
      %459 = sbr.rel (%p457) target = $region64
    $region63: #{ncf_forward.1} parent=5 // pred_region
      // Predicated region
      $region65: #{ncf_forward.1} parent=63 // pred_check
        %p460 = pneg %p43
      $region66: #{ncf_forward.1} parent=63 // pred_check_branch
        %462 = sbr.rel (%p460) target = $region68
      $region67: #{ncf_forward.1} parent=63 // pred_region
        %s463 = smul.u32 16, %s23
        %p464 = scmp.lt.s32.totalorder %s463, 47
        %s465 = scalar_select %p464, %s463, 47
        %s466 = smul.addr %s465, 4
        %s467 = scalar_lea.vmem %s0, %s466
        %s468 = smul.u32 16, %s23
      $region68: #{ncf_forward.1} parent=63 // pred_fallthru
        _
      // Predicated region
      $region69: #{ncf_forward.1} parent=63 // pred_check
        %p469 = pneg %p69
      $region70: #{ncf_forward.1} parent=63 // pred_check_branch
        %471 = sbr.rel (%p469) target = $region72
      $region71: #{ncf_forward.1} parent=63 // pred_region
        %s472 = smul.u32 16, %s23
        %p473 = scmp.lt.s32.totalorder %s472, 47
        %s474 = scalar_select %p473, %s472, 47
        %s475 = smul.addr %s474, 4
        %s476 = scalar_lea.vmem %s1, %s475
        %s477 = smul.u32 16, %s23
      $region72: #{ncf_forward.1} parent=63 // pred_fallthru
        _
      // Predicated region
      $region73: #{ncf_forward.1} parent=63 // pred_check
        %p478 = pneg %p95
      $region74: #{ncf_forward.1} parent=63 // pred_check_branch
        %480 = sbr.rel (%p478) target = $region76
      $region75: #{ncf_forward.1} parent=63 // pred_region
        %s481 = smul.u32 16, %s23
        %p482 = scmp.lt.s32.totalorder %s481, 47
        %s483 = scalar_select %p482, %s481, 47
        %s484 = smul.addr %s483, 4
        %s485 = scalar_lea.vmem %s2, %s484
        %s486 = smul.u32 16, %s23
      $region76: #{ncf_forward.1} parent=63 // pred_fallthru
        _
      // Predicated region
      $region77: #{ncf_forward.1} parent=63 // pred_check
        %p487 = pneg %p121
      $region78: #{ncf_forward.1} parent=63 // pred_check_branch
        %489 = sbr.rel (%p487) target = $region80
      $region79: #{ncf_forward.1} parent=63 // pred_region
        %s490 = smul.u32 16, %s23
        %p491 = scmp.lt.s32.totalorder %s490, 47
        %s492 = scalar_select %p491, %s490, 47
        %s493 = smul.addr %s492, 4
        %s494 = scalar_lea.vmem %s3, %s493
        %s495 = smul.u32 16, %s23
      $region80: #{ncf_forward.1} parent=63 // pred_fallthru
        _
    $region64: #{ncf_forward.1} parent=5 // pred_fallthru
      _
    %p496 = scmp.le.s32.totalorder 1, %s23
    %p497 = scmp.lt.s32.totalorder %s23, 4
    %p498 = pnand %p496, %p497
    %p499 = pneg %p498
    // Predicated region
    $region81: #{ncf_forward.1} parent=5 // pred_check
      _
    $region82: #{ncf_forward.1} parent=5 // pred_check_branch
      %501 = sbr.rel (%p498) target = $region84
    $region83: #{ncf_forward.1} parent=5 // pred_region
      %s502 = ssub.s32 %s23, 1
      %s503 = smul.u32 16, %s28
      %p504 = scmp.lt.s32.totalorder %s503, 47
      %s505 = scalar_select %p504, %s503, 47
      %s506 = smul.addr %s505, 4
      %s507 = scalar_lea.vmem %s0, %s506
      %p508 = pneg %p49
      %p509 = pneg %p46
      %s510 = smul.u32 16, %s28
      %p511 = scmp.lt.s32.totalorder %s510, 47
      %s512 = scalar_select %p511, %s510, 47
      %s513 = smul.addr %s512, 4
      %s514 = scalar_lea.vmem %s1, %s513
      %p515 = pneg %p75
      %p516 = pneg %p72
      %s517 = smul.u32 16, %s28
      %p518 = scmp.lt.s32.totalorder %s517, 47
      %s519 = scalar_select %p518, %s517, 47
      %s520 = smul.addr %s519, 4
      %s521 = scalar_lea.vmem %s2, %s520
      %p522 = pneg %p101
      %p523 = pneg %p98
      %s524 = smul.u32 16, %s28
      %p525 = scmp.lt.s32.totalorder %s524, 47
      %s526 = scalar_select %p525, %s524, 47
      %s527 = smul.addr %s526, 4
      %s528 = scalar_lea.vmem %s3, %s527
      %p529 = pneg %p127
      %p530 = pneg %p124
      %p531 = pneg %p148
      %p532 = pneg %p145
      %p533 = pneg %p169
      %p534 = pneg %p166
      %p535 = pneg %p190
      %p536 = pneg %p187
      %p537 = pneg %p211
      %p538 = pneg %p208
      %p539 = pneg %p232
      %p540 = pneg %p229
      %p541 = pneg %p253
      %p542 = pneg %p250
      %p543 = pneg %p274
      %p544 = pneg %p271
      %p545 = pneg %p295
      %p546 = pneg %p292
      %p547 = pneg %p316
      %p548 = pneg %p313
      %p549 = pneg %p337
      %p550 = pneg %p334
      %p551 = pneg %p358
      %p552 = pneg %p355
      %p553 = pneg %p379
      %p554 = pneg %p376
      %p555 = pneg %p405
      %p556 = pneg %p402
      %p557 = scmp.lt.s32.totalorder %s28, 2
      %s558 = scalar_select %p557, %s28, 2
      %s559 = scalar_lea.vmem %s16, %s558
      %s560 = smul.u32 16, %s28
      %p561 = scmp.lt.s32.totalorder %s560, 47
      %s562 = scalar_select %p561, %s560, 47
      %s563 = smul.addr %s562, 4
      %s564 = scalar_lea.vmem %s0, %s563
      %s565 = smul.u32 16, %s28
      %s566 = smul.u32 16, %s28
      %p567 = scmp.lt.s32.totalorder %s566, 47
      %s568 = scalar_select %p567, %s566, 47
      %s569 = smul.addr %s568, 4
      %s570 = scalar_lea.vmem %s1, %s569
      %s571 = smul.u32 16, %s28
      %s572 = smul.u32 16, %s28
      %p573 = scmp.lt.s32.totalorder %s572, 47
      %s574 = scalar_select %p573, %s572, 47
      %s575 = smul.addr %s574, 4
      %s576 = scalar_lea.vmem %s2, %s575
      %s577 = smul.u32 16, %s28
      %s578 = smul.u32 16, %s28
      %p579 = scmp.lt.s32.totalorder %s578, 47
      %s580 = scalar_select %p579, %s578, 47
      %s581 = smul.addr %s580, 4
      %s582 = scalar_lea.vmem %s3, %s581
      %s583 = smul.u32 16, %s28
      %p584 = scmp.lt.s32.totalorder %s28, 2
      %s585 = scalar_select %p584, %s28, 2
      %s586 = scalar_lea.vmem %s16, %s585
      %v587 = vld [vmem:[%s564] sm:$0xf]
      %v588 = vld [vmem:[%s564 + $0x4] sm:$0xf]
      %v589 = vld [vmem:[%s564 + $0x8] sm:$0xf]
      %v590 = vld [vmem:[%s564 + $0xc] sm:$0xf]
      %v591 = vld [vmem:[%s564 + $0x10] sm:$0xf]
      %v592 = vld [vmem:[%s564 + $0x14] sm:$0xf]
      %v593 = vld [vmem:[%s564 + $0x18] sm:$0xf]
      %v594 = vld [vmem:[%s564 + $0x1c] sm:$0xf]
      %v595 = vld [vmem:[%s564 + $0x20] sm:$0xf]
      %v596 = vld [vmem:[%s564 + $0x24] sm:$0xf]
      %v597 = vld [vmem:[%s564 + $0x28] sm:$0xf]
      %v598 = vld [vmem:[%s564 + $0x2c] sm:$0xf]
      %v599 = vld [vmem:[%s564 + $0x30] sm:$0xf]
      %v600 = vld [vmem:[%s564 + $0x34] sm:$0xf]
      %v601 = vld [vmem:[%s564 + $0x38] sm:$0xf]
      %v602 = vld [vmem:[%s564 + $0x3c] sm:$0xf]
      %v603 = vunpack.c.l.bf16 %v587
      %v604 = vunpack.c.l.bf16 %v588
      %v605 = vunpack.c.l.bf16 %v589
      %v606 = vunpack.c.l.bf16 %v590
      %v607 = vunpack.c.l.bf16 %v591
      %v608 = vunpack.c.l.bf16 %v592
      %v609 = vunpack.c.l.bf16 %v593
      %v610 = vunpack.c.l.bf16 %v594
      %v611 = vunpack.c.l.bf16 %v595
      %v612 = vunpack.c.l.bf16 %v596
      %v613 = vunpack.c.l.bf16 %v597
      %v614 = vunpack.c.l.bf16 %v598
      %v615 = vunpack.c.l.bf16 %v599
      %v616 = vunpack.c.l.bf16 %v600
      %v617 = vunpack.c.l.bf16 %v601
      %v618 = vunpack.c.l.bf16 %v602
      %v619 = vld [vmem:[%s570] sm:$0xf]
      %v620 = vld [vmem:[%s570 + $0x4] sm:$0xf]
      %v621 = vld [vmem:[%s570 + $0x8] sm:$0xf]
      %v622 = vld [vmem:[%s570 + $0xc] sm:$0xf]
      %v623 = vld [vmem:[%s570 + $0x10] sm:$0xf]
      %v624 = vld [vmem:[%s570 + $0x14] sm:$0xf]
      %v625 = vld [vmem:[%s570 + $0x18] sm:$0xf]
      %v626 = vld [vmem:[%s570 + $0x1c] sm:$0xf]
      %v627 = vld [vmem:[%s570 + $0x20] sm:$0xf]
      %v628 = vld [vmem:[%s570 + $0x24] sm:$0xf]
      %v629 = vld [vmem:[%s570 + $0x28] sm:$0xf]
      %v630 = vld [vmem:[%s570 + $0x2c] sm:$0xf]
      %v631 = vld [vmem:[%s570 + $0x30] sm:$0xf]
      %v632 = vld [vmem:[%s570 + $0x34] sm:$0xf]
      %v633 = vld [vmem:[%s570 + $0x38] sm:$0xf]
      %v634 = vld [vmem:[%s570 + $0x3c] sm:$0xf]
      %v635 = vunpack.c.l.bf16 %v619
      %v636 = vunpack.c.l.bf16 %v620
      %v637 = vunpack.c.l.bf16 %v621
      %v638 = vunpack.c.l.bf16 %v622
      %v639 = vunpack.c.l.bf16 %v623
      %v640 = vunpack.c.l.bf16 %v624
      %v641 = vunpack.c.l.bf16 %v625
      %v642 = vunpack.c.l.bf16 %v626
      %v643 = vunpack.c.l.bf16 %v627
      %v644 = vunpack.c.l.bf16 %v628
      %v645 = vunpack.c.l.bf16 %v629
      %v646 = vunpack.c.l.bf16 %v630
      %v647 = vunpack.c.l.bf16 %v631
      %v648 = vunpack.c.l.bf16 %v632
      %v649 = vunpack.c.l.bf16 %v633
      %v650 = vunpack.c.l.bf16 %v634
      %v651 = vld [vmem:[%s576] sm:$0xf]
      %v652 = vld [vmem:[%s576 + $0x4] sm:$0xf]
      %v653 = vld [vmem:[%s576 + $0x8] sm:$0xf]
      %v654 = vld [vmem:[%s576 + $0xc] sm:$0xf]
      %v655 = vld [vmem:[%s576 + $0x10] sm:$0xf]
      %v656 = vld [vmem:[%s576 + $0x14] sm:$0xf]
      %v657 = vld [vmem:[%s576 + $0x18] sm:$0xf]
      %v658 = vld [vmem:[%s576 + $0x1c] sm:$0xf]
      %v659 = vld [vmem:[%s576 + $0x20] sm:$0xf]
      %v660 = vld [vmem:[%s576 + $0x24] sm:$0xf]
      %v661 = vld [vmem:[%s576 + $0x28] sm:$0xf]
      %v662 = vld [vmem:[%s576 + $0x2c] sm:$0xf]
      %v663 = vld [vmem:[%s576 + $0x30] sm:$0xf]
      %v664 = vld [vmem:[%s576 + $0x34] sm:$0xf]
      %v665 = vld [vmem:[%s576 + $0x38] sm:$0xf]
      %v666 = vld [vmem:[%s576 + $0x3c] sm:$0xf]
      %v667 = vunpack.c.l.bf16 %v651
      %v668 = vunpack.c.l.bf16 %v652
      %v669 = vunpack.c.l.bf16 %v653
      %v670 = vunpack.c.l.bf16 %v654
      %v671 = vunpack.c.l.bf16 %v655
      %v672 = vunpack.c.l.bf16 %v656
      %v673 = vunpack.c.l.bf16 %v657
      %v674 = vunpack.c.l.bf16 %v658
      %v675 = vunpack.c.l.bf16 %v659
      %v676 = vunpack.c.l.bf16 %v660
      %v677 = vunpack.c.l.bf16 %v661
      %v678 = vunpack.c.l.bf16 %v662
      %v679 = vunpack.c.l.bf16 %v663
      %v680 = vunpack.c.l.bf16 %v664
      %v681 = vunpack.c.l.bf16 %v665
      %v682 = vunpack.c.l.bf16 %v666
      %v683 = vld [vmem:[%s582] sm:$0xf]
      %v684 = vld [vmem:[%s582 + $0x4] sm:$0xf]
      %v685 = vld [vmem:[%s582 + $0x8] sm:$0xf]
      %v686 = vld [vmem:[%s582 + $0xc] sm:$0xf]
      %v687 = vld [vmem:[%s582 + $0x10] sm:$0xf]
      %v688 = vld [vmem:[%s582 + $0x14] sm:$0xf]
      %v689 = vld [vmem:[%s582 + $0x18] sm:$0xf]
      %v690 = vld [vmem:[%s582 + $0x1c] sm:$0xf]
      %v691 = vld [vmem:[%s582 + $0x20] sm:$0xf]
      %v692 = vld [vmem:[%s582 + $0x24] sm:$0xf]
      %v693 = vld [vmem:[%s582 + $0x28] sm:$0xf]
      %v694 = vld [vmem:[%s582 + $0x2c] sm:$0xf]
      %v695 = vld [vmem:[%s582 + $0x30] sm:$0xf]
      %v696 = vld [vmem:[%s582 + $0x34] sm:$0xf]
      %v697 = vld [vmem:[%s582 + $0x38] sm:$0xf]
      %v698 = vld [vmem:[%s582 + $0x3c] sm:$0xf]
      %v699 = vunpack.c.l.bf16 %v683
      %v700 = vunpack.c.l.bf16 %v684
      %v701 = vunpack.c.l.bf16 %v685
      %v702 = vunpack.c.l.bf16 %v686
      %v703 = vunpack.c.l.bf16 %v687
      %v704 = vunpack.c.l.bf16 %v688
      %v705 = vunpack.c.l.bf16 %v689
      %v706 = vunpack.c.l.bf16 %v690
      %v707 = vunpack.c.l.bf16 %v691
      %v708 = vunpack.c.l.bf16 %v692
      %v709 = vunpack.c.l.bf16 %v693
      %v710 = vunpack.c.l.bf16 %v694
      %v711 = vunpack.c.l.bf16 %v695
      %v712 = vunpack.c.l.bf16 %v696
      %v713 = vunpack.c.l.bf16 %v697
      %v714 = vunpack.c.l.bf16 %v698
      %v715 = vmul.f32 %v603, %v635
      %v716 = vmul.f32 %v604, %v636
      %v717 = vmul.f32 %v605, %v637
      %v718 = vmul.f32 %v606, %v638
      %v719 = vmul.f32 %v607, %v639
      %v720 = vmul.f32 %v608, %v640
      %v721 = vmul.f32 %v609, %v641
      %v722 = vmul.f32 %v610, %v642
      %v723 = vmul.f32 %v611, %v643
      %v724 = vmul.f32 %v612, %v644
      %v725 = vmul.f32 %v613, %v645
      %v726 = vmul.f32 %v614, %v646
      %v727 = vmul.f32 %v615, %v647
      %v728 = vmul.f32 %v616, %v648
      %v729 = vmul.f32 %v617, %v649
      %v730 = vmul.f32 %v618, %v650
      %v731 = vld [vmem:[%s4] sm:$0xff]
      %v732 = vld [vmem:[%s4 + $0x8] sm:$0xff]
      %v733 = vld [vmem:[%s5] sm:$0xff]
      %v734 = vld [vmem:[%s5 + $0x8] sm:$0xff]
      %vm735 = vcmask 130048
      %v737 = vsel %vm735, %v699, 0
      %v740 = vsel %vm735, %v700, 0
      %v743 = vsel %vm735, %v701, 0
      %v746 = vsel %vm735, %v702, 0
      %v749 = vsel %vm735, %v703, 0
      %v752 = vsel %vm735, %v704, 0
      %v755 = vsel %vm735, %v705, 0
      %v758 = vsel %vm735, %v706, 0
      %v761 = vsel %vm735, %v707, 0
      %v764 = vsel %vm735, %v708, 0
      %v767 = vsel %vm735, %v709, 0
      %v770 = vsel %vm735, %v710, 0
      %v773 = vsel %vm735, %v711, 0
      %v776 = vsel %vm735, %v712, 0
      %v779 = vsel %vm735, %v713, 0
      %v782 = vsel %vm735, %v714, 0
      %784 = vmatprep.subr.mxu0 0.0
      %785 = vmatpush1.msra.mxu0 %v733
      %786 = vmatprep.subr.mxu0 0.0
      %787 = vmatpush1.msra.mxu0 %v734
      %788 = vmatprep.subr.mxu0 0.0
      %789 = vmatpush1.msra.mxu0 0.0
      %790 = vmatprep.subr.mxu0 0.0
      %791 = vmatpush1.msra.mxu0 0.0
      %792 = vmatprep.subr.mxu0 0.0
      %793 = vmatpush1.msra.mxu0 0.0
      %794 = vmatprep.subr.mxu0 0.0
      %795 = vmatpush1.msra.mxu0 0.0
      %796 = vmatprep.subr.mxu0 0.0
      %797 = vmatpush1.msra.mxu0 0.0
      %798 = vmatprep.subr.mxu0 0.0
      %799 = vmatpush1.msra.mxu0 0.0
      %800 = vmatprep.subr.mxu0 0.0
      %801 = vmatpush1.msra.mxu0 0.0
      %802 = vmatprep.subr.mxu0 0.0
      %803 = vmatpush1.msra.mxu0 0.0
      %804 = vmatprep.subr.mxu0 0.0
      %805 = vmatpush1.msra.mxu0 0.0
      %806 = vmatprep.subr.mxu0 0.0
      %807 = vmatpush1.msra.mxu0 0.0
      %808 = vmatprep.subr.mxu0 0.0
      %809 = vmatpush1.msra.mxu0 0.0
      %810 = vmatprep.subr.mxu0 0.0
      %811 = vmatpush1.msra.mxu0 0.0
      %812 = vmatprep.subr.mxu0 0.0
      %813 = vmatpush1.msra.mxu0 0.0
      %814 = vmatprep.subr.mxu0 0.0
      %815 = vmatpush1.msra.mxu0 0.0
      %816 = vmatprep.subr.mxu0 0.0
      %817 = vmatpush1.msra.mxu0 0.0
      %818 = vmatprep.subr.mxu0 0.0
      %819 = vmatpush1.msra.mxu0 0.0
      %820 = vmatprep.subr.mxu0 0.0
      %821 = vmatpush1.msra.mxu0 0.0
      %822 = vmatprep.subr.mxu0 0.0
      %823 = vmatpush1.msra.mxu0 0.0
      %824 = vmatprep.subr.mxu0 0.0
      %825 = vmatpush1.msra.mxu0 0.0
      %826 = vmatprep.subr.mxu0 0.0
      %827 = vmatpush1.msra.mxu0 0.0
      %828 = vmatprep.subr.mxu0 0.0
      %829 = vmatpush1.msra.mxu0 0.0
      %830 = vmatprep.subr.mxu0 0.0
      %831 = vmatpush1.msra.mxu0 0.0
      %832 = vmatprep.subr.mxu0 0.0
      %833 = vmatpush1.msra.mxu0 0.0
      %834 = vmatprep.subr.mxu0 0.0
      %835 = vmatpush1.msra.mxu0 0.0
      %836 = vmatprep.subr.mxu0 0.0
      %837 = vmatpush1.msra.mxu0 0.0
      %838 = vmatprep.subr.mxu0 0.0
      %839 = vmatpush1.msra.mxu0 0.0
      %840 = vmatprep.subr.mxu0 0.0
      %841 = vmatpush1.msra.mxu0 0.0
      %842 = vmatprep.subr.mxu0 0.0
      %843 = vmatpush1.msra.mxu0 0.0
      %844 = vmatprep.subr.mxu0 0.0
      %845 = vmatpush1.msra.mxu0 0.0
      %846 = vmatprep.subr.mxu0 0.0
      %847 = vmatpush1.msra.mxu0 0.0
      %848 = vmatprep.mubr.f32.mxu0 0.0
      %849 = vmatmul.mubr.f32.gmra.mrb[0].mxu0 %v737
      %v850 = vpop.f32.mrb[0].mxu0
      %v851 = vadd.f32 0.0, %v850
      %v852 = vpop.f32.mrb[0].mxu0
      %853 = vmatprep.mubr.f32.mxu0 0.0
      %854 = vmatmul.mubr.f32.gmra.mrb[0].mxu0 %v740
      %v855 = vpop.f32.mrb[0].mxu0
      %v856 = vadd.f32 0.0, %v855
      %v857 = vpop.f32.mrb[0].mxu0
      %858 = vmatprep.mubr.f32.mxu0 0.0
      %859 = vmatmul.mubr.f32.gmra.mrb[0].mxu0 %v743
      %v860 = vpop.f32.mrb[0].mxu0
      %v861 = vadd.f32 0.0, %v860
      %v862 = vpop.f32.mrb[0].mxu0
      %863 = vmatprep.mubr.f32.mxu0 0.0
      %864 = vmatmul.mubr.f32.gmra.mrb[0].mxu0 %v746
      %v865 = vpop.f32.mrb[0].mxu0
      %v866 = vadd.f32 0.0, %v865
      %v867 = vpop.f32.mrb[0].mxu0
      %868 = vmatprep.mubr.f32.mxu0 0.0
      %869 = vmatmul.mubr.f32.gmra.mrb[0].mxu0 %v749
      %v870 = vpop.f32.mrb[0].mxu0
      %v871 = vadd.f32 0.0, %v870
      %v872 = vpop.f32.mrb[0].mxu0
      %873 = vmatprep.mubr.f32.mxu0 0.0
      %874 = vmatmul.mubr.f32.gmra.mrb[0].mxu0 %v752
      %v875 = vpop.f32.mrb[0].mxu0
      %v876 = vadd.f32 0.0, %v875
      %v877 = vpop.f32.mrb[0].mxu0
      %878 = vmatprep.mubr.f32.mxu0 0.0
      %879 = vmatmul.mubr.f32.gmra.mrb[0].mxu0 %v755
      %v880 = vpop.f32.mrb[0].mxu0
      %v881 = vadd.f32 0.0, %v880
      %v882 = vpop.f32.mrb[0].mxu0
      %883 = vmatprep.mubr.f32.mxu0 0.0
      %884 = vmatmul.mubr.f32.gmra.mrb[0].mxu0 %v758
      %v885 = vpop.f32.mrb[0].mxu0
      %v886 = vadd.f32 0.0, %v885
      %v887 = vpop.f32.mrb[0].mxu0
      %888 = vmatprep.mubr.f32.mxu0 0.0
      %889 = vmatmul.mubr.f32.gmra.mrb[0].mxu0 %v761
      %v890 = vpop.f32.mrb[0].mxu0
      %v891 = vadd.f32 0.0, %v890
      %v892 = vpop.f32.mrb[0].mxu0
      %893 = vmatprep.mubr.f32.mxu0 0.0
      %894 = vmatmul.mubr.f32.gmra.mrb[0].mxu0 %v764
      %v895 = vpop.f32.mrb[0].mxu0
      %v896 = vadd.f32 0.0, %v895
      %v897 = vpop.f32.mrb[0].mxu0
      %898 = vmatprep.mubr.f32.mxu0 0.0
      %899 = vmatmul.mubr.f32.gmra.mrb[0].mxu0 %v767
      %v900 = vpop.f32.mrb[0].mxu0
      %v901 = vadd.f32 0.0, %v900
      %v902 = vpop.f32.mrb[0].mxu0
      %903 = vmatprep.mubr.f32.mxu0 0.0
      %904 = vmatmul.mubr.f32.gmra.mrb[0].mxu0 %v770
      %v905 = vpop.f32.mrb[0].mxu0
      %v906 = vadd.f32 0.0, %v905
      %v907 = vpop.f32.mrb[0].mxu0
      %908 = vmatprep.mubr.f32.mxu0 0.0
      %909 = vmatmul.mubr.f32.gmra.mrb[0].mxu0 %v773
      %v910 = vpop.f32.mrb[0].mxu0
      %v911 = vadd.f32 0.0, %v910
      %v912 = vpop.f32.mrb[0].mxu0
      %913 = vmatprep.mubr.f32.mxu0 0.0
      %914 = vmatmul.mubr.f32.gmra.mrb[0].mxu0 %v776
      %v915 = vpop.f32.mrb[0].mxu0
      %v916 = vadd.f32 0.0, %v915
      %v917 = vpop.f32.mrb[0].mxu0
      %918 = vmatprep.mubr.f32.mxu0 0.0
      %919 = vmatmul.mubr.f32.gmra.mrb[0].mxu0 %v779
      %v920 = vpop.f32.mrb[0].mxu0
      %v921 = vadd.f32 0.0, %v920
      %v922 = vpop.f32.mrb[0].mxu0
      %923 = vmatprep.mubr.f32.mxu0 0.0
      %924 = vmatmul.mubr.f32.gmra.mrb[0].mxu0 %v782
      %v925 = vpop.f32.mrb[0].mxu0
      %v926 = vadd.f32 0.0, %v925
      %v927 = vpop.f32.mrb[0].mxu0
      %928 = vdwg.mxu0
      %v930 = vsel %vm735, %v667, 0
      %v933 = vsel %vm735, %v668, 0
      %v936 = vsel %vm735, %v669, 0
      %v939 = vsel %vm735, %v670, 0
      %v942 = vsel %vm735, %v671, 0
      %v945 = vsel %vm735, %v672, 0
      %v948 = vsel %vm735, %v673, 0
      %v951 = vsel %vm735, %v674, 0
      %v954 = vsel %vm735, %v675, 0
      %v957 = vsel %vm735, %v676, 0
      %v960 = vsel %vm735, %v677, 0
      %v963 = vsel %vm735, %v678, 0
      %v966 = vsel %vm735, %v679, 0
      %v969 = vsel %vm735, %v680, 0
      %v972 = vsel %vm735, %v681, 0
      %v975 = vsel %vm735, %v682, 0
      %977 = vmatprep.subr.mxu0 0.0
      %978 = vmatpush1.msra.mxu0 %v731
      %979 = vmatprep.subr.mxu0 0.0
      %980 = vmatpush1.msra.mxu0 %v732
      %981 = vmatprep.subr.mxu0 0.0
      %982 = vmatpush1.msra.mxu0 0.0
      %983 = vmatprep.subr.mxu0 0.0
      %984 = vmatpush1.msra.mxu0 0.0
      %985 = vmatprep.subr.mxu0 0.0
      %986 = vmatpush1.msra.mxu0 0.0
      %987 = vmatprep.subr.mxu0 0.0
      %988 = vmatpush1.msra.mxu0 0.0
      %989 = vmatprep.subr.mxu0 0.0
      %990 = vmatpush1.msra.mxu0 0.0
      %991 = vmatprep.subr.mxu0 0.0
      %992 = vmatpush1.msra.mxu0 0.0
      %993 = vmatprep.subr.mxu0 0.0
      %994 = vmatpush1.msra.mxu0 0.0
      %995 = vmatprep.subr.mxu0 0.0
      %996 = vmatpush1.msra.mxu0 0.0
      %997 = vmatprep.subr.mxu0 0.0
      %998 = vmatpush1.msra.mxu0 0.0
      %999 = vmatprep.subr.mxu0 0.0
      %1000 = vmatpush1.msra.mxu0 0.0
      %1001 = vmatprep.subr.mxu0 0.0
      %1002 = vmatpush1.msra.mxu0 0.0
      %1003 = vmatprep.subr.mxu0 0.0
      %1004 = vmatpush1.msra.mxu0 0.0
      %1005 = vmatprep.subr.mxu0 0.0
      %1006 = vmatpush1.msra.mxu0 0.0
      %1007 = vmatprep.subr.mxu0 0.0
      %1008 = vmatpush1.msra.mxu0 0.0
      %1009 = vmatprep.subr.mxu0 0.0
      %1010 = vmatpush1.msra.mxu0 0.0
      %1011 = vmatprep.subr.mxu0 0.0
      %1012 = vmatpush1.msra.mxu0 0.0
      %1013 = vmatprep.subr.mxu0 0.0
      %1014 = vmatpush1.msra.mxu0 0.0
      %1015 = vmatprep.subr.mxu0 0.0
      %1016 = vmatpush1.msra.mxu0 0.0
      %1017 = vmatprep.subr.mxu0 0.0
      %1018 = vmatpush1.msra.mxu0 0.0
      %1019 = vmatprep.subr.mxu0 0.0
      %1020 = vmatpush1.msra.mxu0 0.0
      %1021 = vmatprep.subr.mxu0 0.0
      %1022 = vmatpush1.msra.mxu0 0.0
      %1023 = vmatprep.subr.mxu0 0.0
      %1024 = vmatpush1.msra.mxu0 0.0
      %1025 = vmatprep.subr.mxu0 0.0
      %1026 = vmatpush1.msra.mxu0 0.0
      %1027 = vmatprep.subr.mxu0 0.0
      %1028 = vmatpush1.msra.mxu0 0.0
      %1029 = vmatprep.subr.mxu0 0.0
      %1030 = vmatpush1.msra.mxu0 0.0
      %1031 = vmatprep.subr.mxu0 0.0
      %1032 = vmatpush1.msra.mxu0 0.0
      %1033 = vmatprep.subr.mxu0 0.0
      %1034 = vmatpush1.msra.mxu0 0.0
      %1035 = vmatprep.subr.mxu0 0.0
      %1036 = vmatpush1.msra.mxu0 0.0
      %1037 = vmatprep.subr.mxu0 0.0
      %1038 = vmatpush1.msra.mxu0 0.0
      %1039 = vmatprep.subr.mxu0 0.0
      %1040 = vmatpush1.msra.mxu0 0.0
      %1041 = vmatprep.mubr.f32.mxu0 0.0
      %1042 = vmatmul.mubr.f32.gmra.mrb[0].mxu0 %v930
      %v1043 = vpop.f32.mrb[0].mxu0
      %v1044 = vadd.f32 %v851, %v1043
      %v1045 = vpop.f32.mrb[0].mxu0
      %1046 = vmatprep.mubr.f32.mxu0 0.0
      %1047 = vmatmul.mubr.f32.gmra.mrb[0].mxu0 %v933
      %v1048 = vpop.f32.mrb[0].mxu0
      %v1049 = vadd.f32 %v856, %v1048
      %v1050 = vpop.f32.mrb[0].mxu0
      %1051 = vmatprep.mubr.f32.mxu0 0.0
      %1052 = vmatmul.mubr.f32.gmra.mrb[0].mxu0 %v936
      %v1053 = vpop.f32.mrb[0].mxu0
      %v1054 = vadd.f32 %v861, %v1053
      %v1055 = vpop.f32.mrb[0].mxu0
      %1056 = vmatprep.mubr.f32.mxu0 0.0
      %1057 = vmatmul.mubr.f32.gmra.mrb[0].mxu0 %v939
      %v1058 = vpop.f32.mrb[0].mxu0
      %v1059 = vadd.f32 %v866, %v1058
      %v1060 = vpop.f32.mrb[0].mxu0
      %1061 = vmatprep.mubr.f32.mxu0 0.0
      %1062 = vmatmul.mubr.f32.gmra.mrb[0].mxu0 %v942
      %v1063 = vpop.f32.mrb[0].mxu0
      %v1064 = vadd.f32 %v871, %v1063
      %v1065 = vpop.f32.mrb[0].mxu0
      %1066 = vmatprep.mubr.f32.mxu0 0.0
      %1067 = vmatmul.mubr.f32.gmra.mrb[0].mxu0 %v945
      %v1068 = vpop.f32.mrb[0].mxu0
      %v1069 = vadd.f32 %v876, %v1068
      %v1070 = vpop.f32.mrb[0].mxu0
      %1071 = vmatprep.mubr.f32.mxu0 0.0
      %1072 = vmatmul.mubr.f32.gmra.mrb[0].mxu0 %v948
      %v1073 = vpop.f32.mrb[0].mxu0
      %v1074 = vadd.f32 %v881, %v1073
      %v1075 = vpop.f32.mrb[0].mxu0
      %1076 = vmatprep.mubr.f32.mxu0 0.0
      %1077 = vmatmul.mubr.f32.gmra.mrb[0].mxu0 %v951
      %v1078 = vpop.f32.mrb[0].mxu0
      %v1079 = vadd.f32 %v886, %v1078
      %v1080 = vpop.f32.mrb[0].mxu0
      %1081 = vmatprep.mubr.f32.mxu0 0.0
      %1082 = vmatmul.mubr.f32.gmra.mrb[0].mxu0 %v954
      %v1083 = vpop.f32.mrb[0].mxu0
      %v1084 = vadd.f32 %v891, %v1083
      %v1085 = vpop.f32.mrb[0].mxu0
      %1086 = vmatprep.mubr.f32.mxu0 0.0
      %1087 = vmatmul.mubr.f32.gmra.mrb[0].mxu0 %v957
      %v1088 = vpop.f32.mrb[0].mxu0
      %v1089 = vadd.f32 %v896, %v1088
      %v1090 = vpop.f32.mrb[0].mxu0
      %1091 = vmatprep.mubr.f32.mxu0 0.0
      %1092 = vmatmul.mubr.f32.gmra.mrb[0].mxu0 %v960
      %v1093 = vpop.f32.mrb[0].mxu0
      %v1094 = vadd.f32 %v901, %v1093
      %v1095 = vpop.f32.mrb[0].mxu0
      %1096 = vmatprep.mubr.f32.mxu0 0.0
      %1097 = vmatmul.mubr.f32.gmra.mrb[0].mxu0 %v963
      %v1098 = vpop.f32.mrb[0].mxu0
      %v1099 = vadd.f32 %v906, %v1098
      %v1100 = vpop.f32.mrb[0].mxu0
      %1101 = vmatprep.mubr.f32.mxu0 0.0
      %1102 = vmatmul.mubr.f32.gmra.mrb[0].mxu0 %v966
      %v1103 = vpop.f32.mrb[0].mxu0
      %v1104 = vadd.f32 %v911, %v1103
      %v1105 = vpop.f32.mrb[0].mxu0
      %1106 = vmatprep.mubr.f32.mxu0 0.0
      %1107 = vmatmul.mubr.f32.gmra.mrb[0].mxu0 %v969
      %v1108 = vpop.f32.mrb[0].mxu0
      %v1109 = vadd.f32 %v916, %v1108
      %v1110 = vpop.f32.mrb[0].mxu0
      %1111 = vmatprep.mubr.f32.mxu0 0.0
      %1112 = vmatmul.mubr.f32.gmra.mrb[0].mxu0 %v972
      %v1113 = vpop.f32.mrb[0].mxu0
      %v1114 = vadd.f32 %v921, %v1113
      %v1115 = vpop.f32.mrb[0].mxu0
      %1116 = vmatprep.mubr.f32.mxu0 0.0
      %1117 = vmatmul.mubr.f32.gmra.mrb[0].mxu0 %v975
      %v1118 = vpop.f32.mrb[0].mxu0
      %v1119 = vadd.f32 %v926, %v1118
      %v1120 = vpop.f32.mrb[0].mxu0
      %1121 = vdwg.mxu0
      %v1122 = vld [vmem:[%s6] sm:$0x1]
      %v1124 = vlaneseq
      %v1125 = vshrl.u32 %v1124, 7
      %v1126 = vsub.s32 0, %v1125
      %v1127 = vrot.slane %v1122, %v1126
      %v1129 = vadd.f32 %v1044, %v1127
      %v1130 = vadd.f32 %v1049, %v1127
      %v1131 = vadd.f32 %v1054, %v1127
      %v1132 = vadd.f32 %v1059, %v1127
      %v1133 = vadd.f32 %v1064, %v1127
      %v1134 = vadd.f32 %v1069, %v1127
      %v1135 = vadd.f32 %v1074, %v1127
      %v1136 = vadd.f32 %v1079, %v1127
      %v1137 = vadd.f32 %v1084, %v1127
      %v1138 = vadd.f32 %v1089, %v1127
      %v1139 = vadd.f32 %v1094, %v1127
      %v1140 = vadd.f32 %v1099, %v1127
      %v1141 = vadd.f32 %v1104, %v1127
      %v1142 = vadd.f32 %v1109, %v1127
      %v1143 = vadd.f32 %v1114, %v1127
      %v1144 = vadd.f32 %v1119, %v1127
      %v1145 = vmax.f32 %v1129, 0.0
      %v1146 = vmax.f32 %v1130, 0.0
      %v1147 = vmax.f32 %v1131, 0.0
      %v1148 = vmax.f32 %v1132, 0.0
      %v1149 = vmax.f32 %v1133, 0.0
      %v1150 = vmax.f32 %v1134, 0.0
      %v1151 = vmax.f32 %v1135, 0.0
      %v1152 = vmax.f32 %v1136, 0.0
      %v1153 = vmax.f32 %v1137, 0.0
      %v1154 = vmax.f32 %v1138, 0.0
      %v1155 = vmax.f32 %v1139, 0.0
      %v1156 = vmax.f32 %v1140, 0.0
      %v1157 = vmax.f32 %v1141, 0.0
      %v1158 = vmax.f32 %v1142, 0.0
      %v1159 = vmax.f32 %v1143, 0.0
      %v1160 = vmax.f32 %v1144, 0.0
      %v1161 = vld [vmem:[%s7] sm:$0xff]
      %v1162 = vld [vmem:[%s7 + $0x8] sm:$0xff]
      %v1163 = vld [vmem:[%s7 + $0x10] sm:$0xff]
      %v1164 = vld [vmem:[%s7 + $0x18] sm:$0xff]
      %v1165 = vld [vmem:[%s8] sm:$0x1]
      %v1167 = vlaneseq
      %v1168 = vshrl.u32 %v1167, 7
      %v1169 = vsub.s32 0, %v1168
      %v1170 = vrot.slane %v1165, %v1169
      %vm1172 = vcmask 261120
      %v1174 = vsel %vm1172, %v1145, 0
      %v1177 = vsel %vm1172, %v1146, 0
      %v1180 = vsel %vm1172, %v1147, 0
      %v1183 = vsel %vm1172, %v1148, 0
      %v1186 = vsel %vm1172, %v1149, 0
      %v1189 = vsel %vm1172, %v1150, 0
      %v1192 = vsel %vm1172, %v1151, 0
      %v1195 = vsel %vm1172, %v1152, 0
      %v1198 = vsel %vm1172, %v1153, 0
      %v1201 = vsel %vm1172, %v1154, 0
      %v1204 = vsel %vm1172, %v1155, 0
      %v1207 = vsel %vm1172, %v1156, 0
      %v1210 = vsel %vm1172, %v1157, 0
      %v1213 = vsel %vm1172, %v1158, 0
      %v1216 = vsel %vm1172, %v1159, 0
      %v1219 = vsel %vm1172, %v1160, 0
      %1221 = vmatprep.subr.mxu0 0.0
      %1222 = vmatpush1.msra.mxu0 %v1161
      %1223 = vmatprep.subr.mxu0 0.0
      %1224 = vmatpush1.msra.mxu0 %v1162
      %1225 = vmatprep.subr.mxu0 0.0
      %1226 = vmatpush1.msra.mxu0 %v1163
      %1227 = vmatprep.subr.mxu0 0.0
      %1228 = vmatpush1.msra.mxu0 %v1164
      %1229 = vmatprep.subr.mxu0 0.0
      %1230 = vmatpush1.msra.mxu0 0.0
      %1231 = vmatprep.subr.mxu0 0.0
      %1232 = vmatpush1.msra.mxu0 0.0
      %1233 = vmatprep.subr.mxu0 0.0
      %1234 = vmatpush1.msra.mxu0 0.0
      %1235 = vmatprep.subr.mxu0 0.0
      %1236 = vmatpush1.msra.mxu0 0.0
      %1237 = vmatprep.subr.mxu0 0.0
      %1238 = vmatpush1.msra.mxu0 0.0
      %1239 = vmatprep.subr.mxu0 0.0
      %1240 = vmatpush1.msra.mxu0 0.0
      %1241 = vmatprep.subr.mxu0 0.0
      %1242 = vmatpush1.msra.mxu0 0.0
      %1243 = vmatprep.subr.mxu0 0.0
      %1244 = vmatpush1.msra.mxu0 0.0
      %1245 = vmatprep.subr.mxu0 0.0
      %1246 = vmatpush1.msra.mxu0 0.0
      %1247 = vmatprep.subr.mxu0 0.0
      %1248 = vmatpush1.msra.mxu0 0.0
      %1249 = vmatprep.subr.mxu0 0.0
      %1250 = vmatpush1.msra.mxu0 0.0
      %1251 = vmatprep.subr.mxu0 0.0
      %1252 = vmatpush1.msra.mxu0 0.0
      %1253 = vmatprep.subr.mxu0 0.0
      %1254 = vmatpush1.msra.mxu0 0.0
      %1255 = vmatprep.subr.mxu0 0.0
      %1256 = vmatpush1.msra.mxu0 0.0
      %1257 = vmatprep.subr.mxu0 0.0
      %1258 = vmatpush1.msra.mxu0 0.0
      %1259 = vmatprep.subr.mxu0 0.0
      %1260 = vmatpush1.msra.mxu0 0.0
      %1261 = vmatprep.subr.mxu0 0.0
      %1262 = vmatpush1.msra.mxu0 0.0
      %1263 = vmatprep.subr.mxu0 0.0
      %1264 = vmatpush1.msra.mxu0 0.0
      %1265 = vmatprep.subr.mxu0 0.0
      %1266 = vmatpush1.msra.mxu0 0.0
      %1267 = vmatprep.subr.mxu0 0.0
      %1268 = vmatpush1.msra.mxu0 0.0
      %1269 = vmatprep.subr.mxu0 0.0
      %1270 = vmatpush1.msra.mxu0 0.0
      %1271 = vmatprep.subr.mxu0 0.0
      %1272 = vmatpush1.msra.mxu0 0.0
      %1273 = vmatprep.subr.mxu0 0.0
      %1274 = vmatpush1.msra.mxu0 0.0
      %1275 = vmatprep.subr.mxu0 0.0
      %1276 = vmatpush1.msra.mxu0 0.0
      %1277 = vmatprep.subr.mxu0 0.0
      %1278 = vmatpush1.msra.mxu0 0.0
      %1279 = vmatprep.subr.mxu0 0.0
      %1280 = vmatpush1.msra.mxu0 0.0
      %1281 = vmatprep.subr.mxu0 0.0
      %1282 = vmatpush1.msra.mxu0 0.0
      %1283 = vmatprep.subr.mxu0 0.0
      %1284 = vmatpush1.msra.mxu0 0.0
      %1285 = vmatprep.mubr.f32.mxu0 0.0
      %1286 = vmatmul.mubr.f32.gmra.mrb[0].mxu0 %v1174
      %v1287 = vpop.f32.mrb[0].mxu0
      %v1288 = vadd.f32 %v1170, %v1287
      %v1289 = vpop.f32.mrb[0].mxu0
      %1290 = vmatprep.mubr.f32.mxu0 0.0
      %1291 = vmatmul.mubr.f32.gmra.mrb[0].mxu0 %v1177
      %v1292 = vpop.f32.mrb[0].mxu0
      %v1293 = vadd.f32 %v1170, %v1292
      %v1294 = vpop.f32.mrb[0].mxu0
      %1295 = vmatprep.mubr.f32.mxu0 0.0
      %1296 = vmatmul.mubr.f32.gmra.mrb[0].mxu0 %v1180
      %v1297 = vpop.f32.mrb[0].mxu0
      %v1298 = vadd.f32 %v1170, %v1297
      %v1299 = vpop.f32.mrb[0].mxu0
      %1300 = vmatprep.mubr.f32.mxu0 0.0
      %1301 = vmatmul.mubr.f32.gmra.mrb[0].mxu0 %v1183
      %v1302 = vpop.f32.mrb[0].mxu0
      %v1303 = vadd.f32 %v1170, %v1302
      %v1304 = vpop.f32.mrb[0].mxu0
      %1305 = vmatprep.mubr.f32.mxu0 0.0
      %1306 = vmatmul.mubr.f32.gmra.mrb[0].mxu0 %v1186
      %v1307 = vpop.f32.mrb[0].mxu0
      %v1308 = vadd.f32 %v1170, %v1307
      %v1309 = vpop.f32.mrb[0].mxu0
      %1310 = vmatprep.mubr.f32.mxu0 0.0
      %1311 = vmatmul.mubr.f32.gmra.mrb[0].mxu0 %v1189
      %v1312 = vpop.f32.mrb[0].mxu0
      %v1313 = vadd.f32 %v1170, %v1312
      %v1314 = vpop.f32.mrb[0].mxu0
      %1315 = vmatprep.mubr.f32.mxu0 0.0
      %1316 = vmatmul.mubr.f32.gmra.mrb[0].mxu0 %v1192
      %v1317 = vpop.f32.mrb[0].mxu0
      %v1318 = vadd.f32 %v1170, %v1317
      %v1319 = vpop.f32.mrb[0].mxu0
      %1320 = vmatprep.mubr.f32.mxu0 0.0
      %1321 = vmatmul.mubr.f32.gmra.mrb[0].mxu0 %v1195
      %v1322 = vpop.f32.mrb[0].mxu0
      %v1323 = vadd.f32 %v1170, %v1322
      %v1324 = vpop.f32.mrb[0].mxu0
      %1325 = vmatprep.mubr.f32.mxu0 0.0
      %1326 = vmatmul.mubr.f32.gmra.mrb[0].mxu0 %v1198
      %v1327 = vpop.f32.mrb[0].mxu0
      %v1328 = vadd.f32 %v1170, %v1327
      %v1329 = vpop.f32.mrb[0].mxu0
      %1330 = vmatprep.mubr.f32.mxu0 0.0
      %1331 = vmatmul.mubr.f32.gmra.mrb[0].mxu0 %v1201
      %v1332 = vpop.f32.mrb[0].mxu0
      %v1333 = vadd.f32 %v1170, %v1332
      %v1334 = vpop.f32.mrb[0].mxu0
      %1335 = vmatprep.mubr.f32.mxu0 0.0
      %1336 = vmatmul.mubr.f32.gmra.mrb[0].mxu0 %v1204
      %v1337 = vpop.f32.mrb[0].mxu0
      %v1338 = vadd.f32 %v1170, %v1337
      %v1339 = vpop.f32.mrb[0].mxu0
      %1340 = vmatprep.mubr.f32.mxu0 0.0
      %1341 = vmatmul.mubr.f32.gmra.mrb[0].mxu0 %v1207
      %v1342 = vpop.f32.mrb[0].mxu0
      %v1343 = vadd.f32 %v1170, %v1342
      %v1344 = vpop.f32.mrb[0].mxu0
      %1345 = vmatprep.mubr.f32.mxu0 0.0
      %1346 = vmatmul.mubr.f32.gmra.mrb[0].mxu0 %v1210
      %v1347 = vpop.f32.mrb[0].mxu0
      %v1348 = vadd.f32 %v1170, %v1347
      %v1349 = vpop.f32.mrb[0].mxu0
      %1350 = vmatprep.mubr.f32.mxu0 0.0
      %1351 = vmatmul.mubr.f32.gmra.mrb[0].mxu0 %v1213
      %v1352 = vpop.f32.mrb[0].mxu0
      %v1353 = vadd.f32 %v1170, %v1352
      %v1354 = vpop.f32.mrb[0].mxu0
      %1355 = vmatprep.mubr.f32.mxu0 0.0
      %1356 = vmatmul.mubr.f32.gmra.mrb[0].mxu0 %v1216
      %v1357 = vpop.f32.mrb[0].mxu0
      %v1358 = vadd.f32 %v1170, %v1357
      %v1359 = vpop.f32.mrb[0].mxu0
      %1360 = vmatprep.mubr.f32.mxu0 0.0
      %1361 = vmatmul.mubr.f32.gmra.mrb[0].mxu0 %v1219
      %v1362 = vpop.f32.mrb[0].mxu0
      %v1363 = vadd.f32 %v1170, %v1362
      %v1364 = vpop.f32.mrb[0].mxu0
      %1365 = vdwg.mxu0
      %v1366 = vmax.f32 %v1288, 0.0
      %v1367 = vmax.f32 %v1293, 0.0
      %v1368 = vmax.f32 %v1298, 0.0
      %v1369 = vmax.f32 %v1303, 0.0
      %v1370 = vmax.f32 %v1308, 0.0
      %v1371 = vmax.f32 %v1313, 0.0
      %v1372 = vmax.f32 %v1318, 0.0
      %v1373 = vmax.f32 %v1323, 0.0
      %v1374 = vmax.f32 %v1328, 0.0
      %v1375 = vmax.f32 %v1333, 0.0
      %v1376 = vmax.f32 %v1338, 0.0
      %v1377 = vmax.f32 %v1343, 0.0
      %v1378 = vmax.f32 %v1348, 0.0
      %v1379 = vmax.f32 %v1353, 0.0
      %v1380 = vmax.f32 %v1358, 0.0
      %v1381 = vmax.f32 %v1363, 0.0
      %v1382 = vld [vmem:[%s9] sm:$0xff]
      %v1383 = vld [vmem:[%s9 + $0x8] sm:$0xff]
      %v1384 = vld [vmem:[%s10] sm:$0x1]
      %v1386 = vlaneseq
      %v1387 = vshrl.u32 %v1386, 7
      %v1388 = vsub.s32 0, %v1387
      %v1389 = vrot.slane %v1384, %v1388
      %v1392 = vsel %vm735, %v1366, 0
      %v1395 = vsel %vm735, %v1367, 0
      %v1398 = vsel %vm735, %v1368, 0
      %v1401 = vsel %vm735, %v1369, 0
      %v1404 = vsel %vm735, %v1370, 0
      %v1407 = vsel %vm735, %v1371, 0
      %v1410 = vsel %vm735, %v1372, 0
      %v1413 = vsel %vm735, %v1373, 0
      %v1416 = vsel %vm735, %v1374, 0
      %v1419 = vsel %vm735, %v1375, 0
      %v1422 = vsel %vm735, %v1376, 0
      %v1425 = vsel %vm735, %v1377, 0
      %v1428 = vsel %vm735, %v1378, 0
      %v1431 = vsel %vm735, %v1379, 0
      %v1434 = vsel %vm735, %v1380, 0
      %v1437 = vsel %vm735, %v1381, 0
      %1439 = vmatprep.subr.mxu0 0.0
      %1440 = vmatpush1.msra.mxu0 %v1382
      %1441 = vmatprep.subr.mxu0 0.0
      %1442 = vmatpush1.msra.mxu0 %v1383
      %1443 = vmatprep.subr.mxu0 0.0
      %1444 = vmatpush1.msra.mxu0 0.0
      %1445 = vmatprep.subr.mxu0 0.0
      %1446 = vmatpush1.msra.mxu0 0.0
      %1447 = vmatprep.subr.mxu0 0.0
      %1448 = vmatpush1.msra.mxu0 0.0
      %1449 = vmatprep.subr.mxu0 0.0
      %1450 = vmatpush1.msra.mxu0 0.0
      %1451 = vmatprep.subr.mxu0 0.0
      %1452 = vmatpush1.msra.mxu0 0.0
      %1453 = vmatprep.subr.mxu0 0.0
      %1454 = vmatpush1.msra.mxu0 0.0
      %1455 = vmatprep.subr.mxu0 0.0
      %1456 = vmatpush1.msra.mxu0 0.0
      %1457 = vmatprep.subr.mxu0 0.0
      %1458 = vmatpush1.msra.mxu0 0.0
      %1459 = vmatprep.subr.mxu0 0.0
      %1460 = vmatpush1.msra.mxu0 0.0
      %1461 = vmatprep.subr.mxu0 0.0
      %1462 = vmatpush1.msra.mxu0 0.0
      %1463 = vmatprep.subr.mxu0 0.0
      %1464 = vmatpush1.msra.mxu0 0.0
      %1465 = vmatprep.subr.mxu0 0.0
      %1466 = vmatpush1.msra.mxu0 0.0
      %1467 = vmatprep.subr.mxu0 0.0
      %1468 = vmatpush1.msra.mxu0 0.0
      %1469 = vmatprep.subr.mxu0 0.0
      %1470 = vmatpush1.msra.mxu0 0.0
      %1471 = vmatprep.subr.mxu0 0.0
      %1472 = vmatpush1.msra.mxu0 0.0
      %1473 = vmatprep.subr.mxu0 0.0
      %1474 = vmatpush1.msra.mxu0 0.0
      %1475 = vmatprep.subr.mxu0 0.0
      %1476 = vmatpush1.msra.mxu0 0.0
      %1477 = vmatprep.subr.mxu0 0.0
      %1478 = vmatpush1.msra.mxu0 0.0
      %1479 = vmatprep.subr.mxu0 0.0
      %1480 = vmatpush1.msra.mxu0 0.0
      %1481 = vmatprep.subr.mxu0 0.0
      %1482 = vmatpush1.msra.mxu0 0.0
      %1483 = vmatprep.subr.mxu0 0.0
      %1484 = vmatpush1.msra.mxu0 0.0
      %1485 = vmatprep.subr.mxu0 0.0
      %1486 = vmatpush1.msra.mxu0 0.0
      %1487 = vmatprep.subr.mxu0 0.0
      %1488 = vmatpush1.msra.mxu0 0.0
      %1489 = vmatprep.subr.mxu0 0.0
      %1490 = vmatpush1.msra.mxu0 0.0
      %1491 = vmatprep.subr.mxu0 0.0
      %1492 = vmatpush1.msra.mxu0 0.0
      %1493 = vmatprep.subr.mxu0 0.0
      %1494 = vmatpush1.msra.mxu0 0.0
      %1495 = vmatprep.subr.mxu0 0.0
      %1496 = vmatpush1.msra.mxu0 0.0
      %1497 = vmatprep.subr.mxu0 0.0
      %1498 = vmatpush1.msra.mxu0 0.0
      %1499 = vmatprep.subr.mxu0 0.0
      %1500 = vmatpush1.msra.mxu0 0.0
      %1501 = vmatprep.subr.mxu0 0.0
      %1502 = vmatpush1.msra.mxu0 0.0
      %1503 = vmatprep.mubr.f32.mxu0 0.0
      %1504 = vmatmul.mubr.f32.gmra.mrb[0].mxu0 %v1392
      %v1505 = vpop.f32.mrb[0].mxu0
      %v1506 = vadd.f32 %v1389, %v1505
      %v1507 = vpop.f32.mrb[0].mxu0
      %1508 = vmatprep.mubr.f32.mxu0 0.0
      %1509 = vmatmul.mubr.f32.gmra.mrb[0].mxu0 %v1395
      %v1510 = vpop.f32.mrb[0].mxu0
      %v1511 = vadd.f32 %v1389, %v1510
      %v1512 = vpop.f32.mrb[0].mxu0
      %1513 = vmatprep.mubr.f32.mxu0 0.0
      %1514 = vmatmul.mubr.f32.gmra.mrb[0].mxu0 %v1398
      %v1515 = vpop.f32.mrb[0].mxu0
      %v1516 = vadd.f32 %v1389, %v1515
      %v1517 = vpop.f32.mrb[0].mxu0
      %1518 = vmatprep.mubr.f32.mxu0 0.0
      %1519 = vmatmul.mubr.f32.gmra.mrb[0].mxu0 %v1401
      %v1520 = vpop.f32.mrb[0].mxu0
      %v1521 = vadd.f32 %v1389, %v1520
      %v1522 = vpop.f32.mrb[0].mxu0
      %1523 = vmatprep.mubr.f32.mxu0 0.0
      %1524 = vmatmul.mubr.f32.gmra.mrb[0].mxu0 %v1404
      %v1525 = vpop.f32.mrb[0].mxu0
      %v1526 = vadd.f32 %v1389, %v1525
      %v1527 = vpop.f32.mrb[0].mxu0
      %1528 = vmatprep.mubr.f32.mxu0 0.0
      %1529 = vmatmul.mubr.f32.gmra.mrb[0].mxu0 %v1407
      %v1530 = vpop.f32.mrb[0].mxu0
      %v1531 = vadd.f32 %v1389, %v1530
      %v1532 = vpop.f32.mrb[0].mxu0
      %1533 = vmatprep.mubr.f32.mxu0 0.0
      %1534 = vmatmul.mubr.f32.gmra.mrb[0].mxu0 %v1410
      %v1535 = vpop.f32.mrb[0].mxu0
      %v1536 = vadd.f32 %v1389, %v1535
      %v1537 = vpop.f32.mrb[0].mxu0
      %1538 = vmatprep.mubr.f32.mxu0 0.0
      %1539 = vmatmul.mubr.f32.gmra.mrb[0].mxu0 %v1413
      %v1540 = vpop.f32.mrb[0].mxu0
      %v1541 = vadd.f32 %v1389, %v1540
      %v1542 = vpop.f32.mrb[0].mxu0
      %1543 = vmatprep.mubr.f32.mxu0 0.0
      %1544 = vmatmul.mubr.f32.gmra.mrb[0].mxu0 %v1416
      %v1545 = vpop.f32.mrb[0].mxu0
      %v1546 = vadd.f32 %v1389, %v1545
      %v1547 = vpop.f32.mrb[0].mxu0
      %1548 = vmatprep.mubr.f32.mxu0 0.0
      %1549 = vmatmul.mubr.f32.gmra.mrb[0].mxu0 %v1419
      %v1550 = vpop.f32.mrb[0].mxu0
      %v1551 = vadd.f32 %v1389, %v1550
      %v1552 = vpop.f32.mrb[0].mxu0
      %1553 = vmatprep.mubr.f32.mxu0 0.0
      %1554 = vmatmul.mubr.f32.gmra.mrb[0].mxu0 %v1422
      %v1555 = vpop.f32.mrb[0].mxu0
      %v1556 = vadd.f32 %v1389, %v1555
      %v1557 = vpop.f32.mrb[0].mxu0
      %1558 = vmatprep.mubr.f32.mxu0 0.0
      %1559 = vmatmul.mubr.f32.gmra.mrb[0].mxu0 %v1425
      %v1560 = vpop.f32.mrb[0].mxu0
      %v1561 = vadd.f32 %v1389, %v1560
      %v1562 = vpop.f32.mrb[0].mxu0
      %1563 = vmatprep.mubr.f32.mxu0 0.0
      %1564 = vmatmul.mubr.f32.gmra.mrb[0].mxu0 %v1428
      %v1565 = vpop.f32.mrb[0].mxu0
      %v1566 = vadd.f32 %v1389, %v1565
      %v1567 = vpop.f32.mrb[0].mxu0
      %1568 = vmatprep.mubr.f32.mxu0 0.0
      %1569 = vmatmul.mubr.f32.gmra.mrb[0].mxu0 %v1431
      %v1570 = vpop.f32.mrb[0].mxu0
      %v1571 = vadd.f32 %v1389, %v1570
      %v1572 = vpop.f32.mrb[0].mxu0
      %1573 = vmatprep.mubr.f32.mxu0 0.0
      %1574 = vmatmul.mubr.f32.gmra.mrb[0].mxu0 %v1434
      %v1575 = vpop.f32.mrb[0].mxu0
      %v1576 = vadd.f32 %v1389, %v1575
      %v1577 = vpop.f32.mrb[0].mxu0
      %1578 = vmatprep.mubr.f32.mxu0 0.0
      %1579 = vmatmul.mubr.f32.gmra.mrb[0].mxu0 %v1437
      %v1580 = vpop.f32.mrb[0].mxu0
      %v1581 = vadd.f32 %v1389, %v1580
      %v1582 = vpop.f32.mrb[0].mxu0
      %1583 = vdwg.mxu0
      %v1584 = vmax.f32 %v1506, 0.0
      %v1585 = vmax.f32 %v1511, 0.0
      %v1586 = vmax.f32 %v1516, 0.0
      %v1587 = vmax.f32 %v1521, 0.0
      %v1588 = vmax.f32 %v1526, 0.0
      %v1589 = vmax.f32 %v1531, 0.0
      %v1590 = vmax.f32 %v1536, 0.0
      %v1591 = vmax.f32 %v1541, 0.0
      %v1592 = vmax.f32 %v1546, 0.0
      %v1593 = vmax.f32 %v1551, 0.0
      %v1594 = vmax.f32 %v1556, 0.0
      %v1595 = vmax.f32 %v1561, 0.0
      %v1596 = vmax.f32 %v1566, 0.0
      %v1597 = vmax.f32 %v1571, 0.0
      %v1598 = vmax.f32 %v1576, 0.0
      %v1599 = vmax.f32 %v1581, 0.0
      %v1600 = vld [vmem:[%s11] sm:$0xff]
      %v1601 = vld [vmem:[%s12] sm:$0x1]
      %v1603 = vlaneseq
      %v1604 = vshrl.u32 %v1603, 7
      %v1605 = vsub.s32 0, %v1604
      %v1606 = vrot.slane %v1601, %v1605
      %vm1608 = vcmask 64512
      %v1610 = vsel %vm1608, %v1584, 0
      %v1613 = vsel %vm1608, %v1585, 0
      %v1616 = vsel %vm1608, %v1586, 0
      %v1619 = vsel %vm1608, %v1587, 0
      %v1622 = vsel %vm1608, %v1588, 0
      %v1625 = vsel %vm1608, %v1589, 0
      %v1628 = vsel %vm1608, %v1590, 0
      %v1631 = vsel %vm1608, %v1591, 0
      %v1634 = vsel %vm1608, %v1592, 0
      %v1637 = vsel %vm1608, %v1593, 0
      %v1640 = vsel %vm1608, %v1594, 0
      %v1643 = vsel %vm1608, %v1595, 0
      %v1646 = vsel %vm1608, %v1596, 0
      %v1649 = vsel %vm1608, %v1597, 0
      %v1652 = vsel %vm1608, %v1598, 0
      %v1655 = vsel %vm1608, %v1599, 0
      %1657 = vmatprep.subr.mxu0 0.0
      %1658 = vmatpush1.msra.mxu0 %v1600
      %1659 = vmatprep.subr.mxu0 0.0
      %1660 = vmatpush1.msra.mxu0 0.0
      %1661 = vmatprep.subr.mxu0 0.0
      %1662 = vmatpush1.msra.mxu0 0.0
      %1663 = vmatprep.subr.mxu0 0.0
      %1664 = vmatpush1.msra.mxu0 0.0
      %1665 = vmatprep.subr.mxu0 0.0
      %1666 = vmatpush1.msra.mxu0 0.0
      %1667 = vmatprep.subr.mxu0 0.0
      %1668 = vmatpush1.msra.mxu0 0.0
      %1669 = vmatprep.subr.mxu0 0.0
      %1670 = vmatpush1.msra.mxu0 0.0
      %1671 = vmatprep.subr.mxu0 0.0
      %1672 = vmatpush1.msra.mxu0 0.0
      %1673 = vmatprep.subr.mxu0 0.0
      %1674 = vmatpush1.msra.mxu0 0.0
      %1675 = vmatprep.subr.mxu0 0.0
      %1676 = vmatpush1.msra.mxu0 0.0
      %1677 = vmatprep.subr.mxu0 0.0
      %1678 = vmatpush1.msra.mxu0 0.0
      %1679 = vmatprep.subr.mxu0 0.0
      %1680 = vmatpush1.msra.mxu0 0.0
      %1681 = vmatprep.subr.mxu0 0.0
      %1682 = vmatpush1.msra.mxu0 0.0
      %1683 = vmatprep.subr.mxu0 0.0
      %1684 = vmatpush1.msra.mxu0 0.0
      %1685 = vmatprep.subr.mxu0 0.0
      %1686 = vmatpush1.msra.mxu0 0.0
      %1687 = vmatprep.subr.mxu0 0.0
      %1688 = vmatpush1.msra.mxu0 0.0
      %1689 = vmatprep.subr.mxu0 0.0
      %1690 = vmatpush1.msra.mxu0 0.0
      %1691 = vmatprep.subr.mxu0 0.0
      %1692 = vmatpush1.msra.mxu0 0.0
      %1693 = vmatprep.subr.mxu0 0.0
      %1694 = vmatpush1.msra.mxu0 0.0
      %1695 = vmatprep.subr.mxu0 0.0
      %1696 = vmatpush1.msra.mxu0 0.0
      %1697 = vmatprep.subr.mxu0 0.0
      %1698 = vmatpush1.msra.mxu0 0.0
      %1699 = vmatprep.subr.mxu0 0.0
      %1700 = vmatpush1.msra.mxu0 0.0
      %1701 = vmatprep.subr.mxu0 0.0
      %1702 = vmatpush1.msra.mxu0 0.0
      %1703 = vmatprep.subr.mxu0 0.0
      %1704 = vmatpush1.msra.mxu0 0.0
      %1705 = vmatprep.subr.mxu0 0.0
      %1706 = vmatpush1.msra.mxu0 0.0
      %1707 = vmatprep.subr.mxu0 0.0
      %1708 = vmatpush1.msra.mxu0 0.0
      %1709 = vmatprep.subr.mxu0 0.0
      %1710 = vmatpush1.msra.mxu0 0.0
      %1711 = vmatprep.subr.mxu0 0.0
      %1712 = vmatpush1.msra.mxu0 0.0
      %1713 = vmatprep.subr.mxu0 0.0
      %1714 = vmatpush1.msra.mxu0 0.0
      %1715 = vmatprep.subr.mxu0 0.0
      %1716 = vmatpush1.msra.mxu0 0.0
      %1717 = vmatprep.subr.mxu0 0.0
      %1718 = vmatpush1.msra.mxu0 0.0
      %1719 = vmatprep.subr.mxu0 0.0
      %1720 = vmatpush1.msra.mxu0 0.0
      %1721 = vmatprep.mubr.f32.mxu0 0.0
      %1722 = vmatmul.mubr.f32.gmra.mrb[0].mxu0 %v1610
      %v1723 = vpop.f32.mrb[0].mxu0
      %v1724 = vadd.f32 %v1606, %v1723
      %v1725 = vpop.f32.mrb[0].mxu0
      %1726 = vmatprep.mubr.f32.mxu0 0.0
      %1727 = vmatmul.mubr.f32.gmra.mrb[0].mxu0 %v1613
      %v1728 = vpop.f32.mrb[0].mxu0
      %v1729 = vadd.f32 %v1606, %v1728
      %v1730 = vpop.f32.mrb[0].mxu0
      %1731 = vmatprep.mubr.f32.mxu0 0.0
      %1732 = vmatmul.mubr.f32.gmra.mrb[0].mxu0 %v1616
      %v1733 = vpop.f32.mrb[0].mxu0
      %v1734 = vadd.f32 %v1606, %v1733
      %v1735 = vpop.f32.mrb[0].mxu0
      %1736 = vmatprep.mubr.f32.mxu0 0.0
      %1737 = vmatmul.mubr.f32.gmra.mrb[0].mxu0 %v1619
      %v1738 = vpop.f32.mrb[0].mxu0
      %v1739 = vadd.f32 %v1606, %v1738
      %v1740 = vpop.f32.mrb[0].mxu0
      %1741 = vmatprep.mubr.f32.mxu0 0.0
      %1742 = vmatmul.mubr.f32.gmra.mrb[0].mxu0 %v1622
      %v1743 = vpop.f32.mrb[0].mxu0
      %v1744 = vadd.f32 %v1606, %v1743
      %v1745 = vpop.f32.mrb[0].mxu0
      %1746 = vmatprep.mubr.f32.mxu0 0.0
      %1747 = vmatmul.mubr.f32.gmra.mrb[0].mxu0 %v1625
      %v1748 = vpop.f32.mrb[0].mxu0
      %v1749 = vadd.f32 %v1606, %v1748
      %v1750 = vpop.f32.mrb[0].mxu0
      %1751 = vmatprep.mubr.f32.mxu0 0.0
      %1752 = vmatmul.mubr.f32.gmra.mrb[0].mxu0 %v1628
      %v1753 = vpop.f32.mrb[0].mxu0
      %v1754 = vadd.f32 %v1606, %v1753
      %v1755 = vpop.f32.mrb[0].mxu0
      %1756 = vmatprep.mubr.f32.mxu0 0.0
      %1757 = vmatmul.mubr.f32.gmra.mrb[0].mxu0 %v1631
      %v1758 = vpop.f32.mrb[0].mxu0
      %v1759 = vadd.f32 %v1606, %v1758
      %v1760 = vpop.f32.mrb[0].mxu0
      %1761 = vmatprep.mubr.f32.mxu0 0.0
      %1762 = vmatmul.mubr.f32.gmra.mrb[0].mxu0 %v1634
      %v1763 = vpop.f32.mrb[0].mxu0
      %v1764 = vadd.f32 %v1606, %v1763
      %v1765 = vpop.f32.mrb[0].mxu0
      %1766 = vmatprep.mubr.f32.mxu0 0.0
      %1767 = vmatmul.mubr.f32.gmra.mrb[0].mxu0 %v1637
      %v1768 = vpop.f32.mrb[0].mxu0
      %v1769 = vadd.f32 %v1606, %v1768
      %v1770 = vpop.f32.mrb[0].mxu0
      %1771 = vmatprep.mubr.f32.mxu0 0.0
      %1772 = vmatmul.mubr.f32.gmra.mrb[0].mxu0 %v1640
      %v1773 = vpop.f32.mrb[0].mxu0
      %v1774 = vadd.f32 %v1606, %v1773
      %v1775 = vpop.f32.mrb[0].mxu0
      %1776 = vmatprep.mubr.f32.mxu0 0.0
      %1777 = vmatmul.mubr.f32.gmra.mrb[0].mxu0 %v1643
      %v1778 = vpop.f32.mrb[0].mxu0
      %v1779 = vadd.f32 %v1606, %v1778
      %v1780 = vpop.f32.mrb[0].mxu0
      %1781 = vmatprep.mubr.f32.mxu0 0.0
      %1782 = vmatmul.mubr.f32.gmra.mrb[0].mxu0 %v1646
      %v1783 = vpop.f32.mrb[0].mxu0
      %v1784 = vadd.f32 %v1606, %v1783
      %v1785 = vpop.f32.mrb[0].mxu0
      %1786 = vmatprep.mubr.f32.mxu0 0.0
      %1787 = vmatmul.mubr.f32.gmra.mrb[0].mxu0 %v1649
      %v1788 = vpop.f32.mrb[0].mxu0
      %v1789 = vadd.f32 %v1606, %v1788
      %v1790 = vpop.f32.mrb[0].mxu0
      %1791 = vmatprep.mubr.f32.mxu0 0.0
      %1792 = vmatmul.mubr.f32.gmra.mrb[0].mxu0 %v1652
      %v1793 = vpop.f32.mrb[0].mxu0
      %v1794 = vadd.f32 %v1606, %v1793
      %v1795 = vpop.f32.mrb[0].mxu0
      %1796 = vmatprep.mubr.f32.mxu0 0.0
      %1797 = vmatmul.mubr.f32.gmra.mrb[0].mxu0 %v1655
      %v1798 = vpop.f32.mrb[0].mxu0
      %v1799 = vadd.f32 %v1606, %v1798
      %v1800 = vpop.f32.mrb[0].mxu0
      %1801 = vdwg.mxu0
      %v1802 = vmax.f32 %v1724, 0.0
      %v1803 = vmax.f32 %v1729, 0.0
      %v1804 = vmax.f32 %v1734, 0.0
      %v1805 = vmax.f32 %v1739, 0.0
      %v1806 = vmax.f32 %v1744, 0.0
      %v1807 = vmax.f32 %v1749, 0.0
      %v1808 = vmax.f32 %v1754, 0.0
      %v1809 = vmax.f32 %v1759, 0.0
      %v1810 = vmax.f32 %v1764, 0.0
      %v1811 = vmax.f32 %v1769, 0.0
      %v1812 = vmax.f32 %v1774, 0.0
      %v1813 = vmax.f32 %v1779, 0.0
      %v1814 = vmax.f32 %v1784, 0.0
      %v1815 = vmax.f32 %v1789, 0.0
      %v1816 = vmax.f32 %v1794, 0.0
      %v1817 = vmax.f32 %v1799, 0.0
      %v1818 = vld [vmem:[%s13] sm:$0x1]
      %v1819 = vld [vmem:[%s14] sm:$0x1]
      %v1821 = vsel %vm1608, %v1819, 0
      %v1824 = vsel %vm1608, %v1802, 0
      %v1827 = vsel %vm1608, %v1803, 0
      %v1830 = vsel %vm1608, %v1804, 0
      %v1833 = vsel %vm1608, %v1805, 0
      %v1836 = vsel %vm1608, %v1806, 0
      %v1839 = vsel %vm1608, %v1807, 0
      %v1842 = vsel %vm1608, %v1808, 0
      %v1845 = vsel %vm1608, %v1809, 0
      %v1848 = vsel %vm1608, %v1810, 0
      %v1851 = vsel %vm1608, %v1811, 0
      %v1854 = vsel %vm1608, %v1812, 0
      %v1857 = vsel %vm1608, %v1813, 0
      %v1860 = vsel %vm1608, %v1814, 0
      %v1863 = vsel %vm1608, %v1815, 0
      %v1866 = vsel %vm1608, %v1816, 0
      %v1869 = vsel %vm1608, %v1817, 0
      %1871 = vmatprep.subr.mxu0 0.0
      %1872 = vmatpush1.xpose.msra.mxu0 %v1824
      %1873 = vmatprep.subr.mxu0 0.0
      %1874 = vmatpush1.xpose.msra.mxu0 %v1827
      %1875 = vmatprep.subr.mxu0 0.0
      %1876 = vmatpush1.xpose.msra.mxu0 %v1830
      %1877 = vmatprep.subr.mxu0 0.0
      %1878 = vmatpush1.xpose.msra.mxu0 %v1833
      %1879 = vmatprep.subr.mxu0 0.0
      %1880 = vmatpush1.xpose.msra.mxu0 %v1836
      %1881 = vmatprep.subr.mxu0 0.0
      %1882 = vmatpush1.xpose.msra.mxu0 %v1839
      %1883 = vmatprep.subr.mxu0 0.0
      %1884 = vmatpush1.xpose.msra.mxu0 %v1842
      %1885 = vmatprep.subr.mxu0 0.0
      %1886 = vmatpush1.xpose.msra.mxu0 %v1845
      %1887 = vmatprep.subr.mxu0 0.0
      %1888 = vmatpush1.xpose.msra.mxu0 %v1848
      %1889 = vmatprep.subr.mxu0 0.0
      %1890 = vmatpush1.xpose.msra.mxu0 %v1851
      %1891 = vmatprep.subr.mxu0 0.0
      %1892 = vmatpush1.xpose.msra.mxu0 %v1854
      %1893 = vmatprep.subr.mxu0 0.0
      %1894 = vmatpush1.xpose.msra.mxu0 %v1857
      %1895 = vmatprep.subr.mxu0 0.0
      %1896 = vmatpush1.xpose.msra.mxu0 %v1860
      %1897 = vmatprep.subr.mxu0 0.0
      %1898 = vmatpush1.xpose.msra.mxu0 %v1863
      %1899 = vmatprep.subr.mxu0 0.0
      %1900 = vmatpush1.xpose.msra.mxu0 %v1866
      %1901 = vmatprep.subr.mxu0 0.0
      %1902 = vmatpush1.xpose.msra.mxu0 %v1869
      %1903 = vmatprep.subr.mxu0 0.0
      %1904 = vmatpush1.xpose.msra.mxu0 0.0
      %1905 = vmatprep.subr.mxu0 0.0
      %1906 = vmatpush1.xpose.msra.mxu0 0.0
      %1907 = vmatprep.subr.mxu0 0.0
      %1908 = vmatpush1.xpose.msra.mxu0 0.0
      %1909 = vmatprep.subr.mxu0 0.0
      %1910 = vmatpush1.xpose.msra.mxu0 0.0
      %1911 = vmatprep.subr.mxu0 0.0
      %1912 = vmatpush1.xpose.msra.mxu0 0.0
      %1913 = vmatprep.subr.mxu0 0.0
      %1914 = vmatpush1.xpose.msra.mxu0 0.0
      %1915 = vmatprep.subr.mxu0 0.0
      %1916 = vmatpush1.xpose.msra.mxu0 0.0
      %1917 = vmatprep.subr.mxu0 0.0
      %1918 = vmatpush1.xpose.msra.mxu0 0.0
      %1919 = vmatprep.subr.mxu0 0.0
      %1920 = vmatpush1.xpose.msra.mxu0 0.0
      %1921 = vmatprep.subr.mxu0 0.0
      %1922 = vmatpush1.xpose.msra.mxu0 0.0
      %1923 = vmatprep.subr.mxu0 0.0
      %1924 = vmatpush1.xpose.msra.mxu0 0.0
      %1925 = vmatprep.subr.mxu0 0.0
      %1926 = vmatpush1.xpose.msra.mxu0 0.0
      %1927 = vmatprep.subr.mxu0 0.0
      %1928 = vmatpush1.xpose.msra.mxu0 0.0
      %1929 = vmatprep.subr.mxu0 0.0
      %1930 = vmatpush1.xpose.msra.mxu0 0.0
      %1931 = vmatprep.subr.mxu0 0.0
      %1932 = vmatpush1.xpose.msra.mxu0 0.0
      %1933 = vmatprep.subr.mxu0 0.0
      %1934 = vmatpush1.xpose.msra.mxu0 0.0
      %1935 = vmatprep.mubr.f32.mxu0 0.0
      %1936 = vmatmul.mubr.f32.gmra.mrb[0].mxu0 %v1821
      %v1937 = vpop.f32.mrb[0].mxu0
      %v1938 = vadd.f32 0.0, %v1937
      %v1939 = vpop.f32.mrb[0].mxu0
      %1940 = vdwg.mxu0
      %v1942 = vsel %vm735, %v1818, 0
      %v1945 = vsel %vm735, %v715, 0
      %v1948 = vsel %vm735, %v716, 0
      %v1951 = vsel %vm735, %v717, 0
      %v1954 = vsel %vm735, %v718, 0
      %v1957 = vsel %vm735, %v719, 0
      %v1960 = vsel %vm735, %v720, 0
      %v1963 = vsel %vm735, %v721, 0
      %v1966 = vsel %vm735, %v722, 0
      %v1969 = vsel %vm735, %v723, 0
      %v1972 = vsel %vm735, %v724, 0
      %v1975 = vsel %vm735, %v725, 0
      %v1978 = vsel %vm735, %v726, 0
      %v1981 = vsel %vm735, %v727, 0
      %v1984 = vsel %vm735, %v728, 0
      %v1987 = vsel %vm735, %v729, 0
      %v1990 = vsel %vm735, %v730, 0
      %1992 = vmatprep.subr.mxu0 0.0
      %1993 = vmatpush1.xpose.msra.mxu0 %v1945
      %1994 = vmatprep.subr.mxu0 0.0
      %1995 = vmatpush1.xpose.msra.mxu0 %v1948
      %1996 = vmatprep.subr.mxu0 0.0
      %1997 = vmatpush1.xpose.msra.mxu0 %v1951
      %1998 = vmatprep.subr.mxu0 0.0
      %1999 = vmatpush1.xpose.msra.mxu0 %v1954
      %2000 = vmatprep.subr.mxu0 0.0
      %2001 = vmatpush1.xpose.msra.mxu0 %v1957
      %2002 = vmatprep.subr.mxu0 0.0
      %2003 = vmatpush1.xpose.msra.mxu0 %v1960
      %2004 = vmatprep.subr.mxu0 0.0
      %2005 = vmatpush1.xpose.msra.mxu0 %v1963
      %2006 = vmatprep.subr.mxu0 0.0
      %2007 = vmatpush1.xpose.msra.mxu0 %v1966
      %2008 = vmatprep.subr.mxu0 0.0
      %2009 = vmatpush1.xpose.msra.mxu0 %v1969
      %2010 = vmatprep.subr.mxu0 0.0
      %2011 = vmatpush1.xpose.msra.mxu0 %v1972
      %2012 = vmatprep.subr.mxu0 0.0
      %2013 = vmatpush1.xpose.msra.mxu0 %v1975
      %2014 = vmatprep.subr.mxu0 0.0
      %2015 = vmatpush1.xpose.msra.mxu0 %v1978
      %2016 = vmatprep.subr.mxu0 0.0
      %2017 = vmatpush1.xpose.msra.mxu0 %v1981
      %2018 = vmatprep.subr.mxu0 0.0
      %2019 = vmatpush1.xpose.msra.mxu0 %v1984
      %2020 = vmatprep.subr.mxu0 0.0
      %2021 = vmatpush1.xpose.msra.mxu0 %v1987
      %2022 = vmatprep.subr.mxu0 0.0
      %2023 = vmatpush1.xpose.msra.mxu0 %v1990
      %2024 = vmatprep.subr.mxu0 0.0
      %2025 = vmatpush1.xpose.msra.mxu0 0.0
      %2026 = vmatprep.subr.mxu0 0.0
      %2027 = vmatpush1.xpose.msra.mxu0 0.0
      %2028 = vmatprep.subr.mxu0 0.0
      %2029 = vmatpush1.xpose.msra.mxu0 0.0
      %2030 = vmatprep.subr.mxu0 0.0
      %2031 = vmatpush1.xpose.msra.mxu0 0.0
      %2032 = vmatprep.subr.mxu0 0.0
      %2033 = vmatpush1.xpose.msra.mxu0 0.0
      %2034 = vmatprep.subr.mxu0 0.0
      %2035 = vmatpush1.xpose.msra.mxu0 0.0
      %2036 = vmatprep.subr.mxu0 0.0
      %2037 = vmatpush1.xpose.msra.mxu0 0.0
      %2038 = vmatprep.subr.mxu0 0.0
      %2039 = vmatpush1.xpose.msra.mxu0 0.0
      %2040 = vmatprep.subr.mxu0 0.0
      %2041 = vmatpush1.xpose.msra.mxu0 0.0
      %2042 = vmatprep.subr.mxu0 0.0
      %2043 = vmatpush1.xpose.msra.mxu0 0.0
      %2044 = vmatprep.subr.mxu0 0.0
      %2045 = vmatpush1.xpose.msra.mxu0 0.0
      %2046 = vmatprep.subr.mxu0 0.0
      %2047 = vmatpush1.xpose.msra.mxu0 0.0
      %2048 = vmatprep.subr.mxu0 0.0
      %2049 = vmatpush1.xpose.msra.mxu0 0.0
      %2050 = vmatprep.subr.mxu0 0.0
      %2051 = vmatpush1.xpose.msra.mxu0 0.0
      %2052 = vmatprep.subr.mxu0 0.0
      %2053 = vmatpush1.xpose.msra.mxu0 0.0
      %2054 = vmatprep.subr.mxu0 0.0
      %2055 = vmatpush1.xpose.msra.mxu0 0.0
      %2056 = vmatprep.mubr.f32.mxu0 0.0
      %2057 = vmatmul.mubr.f32.gmra.mrb[0].mxu0 %v1942
      %v2058 = vpop.f32.mrb[0].mxu0
      %v2059 = vadd.f32 %v1938, %v2058
      %v2060 = vpop.f32.mrb[0].mxu0
      %2061 = vdwg.mxu0
      %s2062 = sld [smem:[#allocation2]]
      %v2063 = vstv %s2062
      %v2064 = vadd.f32 %v2059, %v2063
      %v2065 = vxor.u32 %v2064, 2147483648
      %v2066 = vmul.f32 %v2065, 1.442695
      %v2067 = vpow.pop %v2066
      %v2068 = vadd.f32 %v2067, 1.0
      %v2069 = vrcp.pop %v2068
      %v2070 = vmul.f32 1.0, %v2069
      %2071 = vst [vmem:[%s586] sm:$0x1] %v2070
      %p2072 = scmp.lt.s32.totalorder %s28, 2
      %s2073 = scalar_select %p2072, %s28, 2
      %s2074 = scalar_lea.vmem %s16, %s2073
      // Predicated region
      $region85: #{ncf_forward.1} parent=83 // pred_check
        %p2075 = pneg %p402
      $region86: #{ncf_forward.1} parent=83 // pred_check_branch
        %2077 = sbr.rel (%p2075) target = $region88
      $region87: #{ncf_forward.1} parent=83 // pred_region
        _
      $region88: #{ncf_forward.1} parent=83 // pred_fallthru
        _
    $region84: #{ncf_forward.1} parent=5 // pred_fallthru
      _
    %p2078 = scmp.le.s32.totalorder 2, %s23
    // Predicated region
    $region89: #{ncf_forward.1} parent=5 // pred_check
      %p2079 = pneg %p2078
    $region90: #{ncf_forward.1} parent=5 // pred_check_branch
      %2081 = sbr.rel (%p2079) target = $region92
    $region91: #{ncf_forward.1} parent=5 // pred_region
      %s2082 = ssub.s32 %s23, 2
      // Predicated region
      $region93: #{ncf_forward.1} parent=91 // pred_check
        %p2083 = pneg %p408
      $region94: #{ncf_forward.1} parent=91 // pred_check_branch
        %2085 = sbr.rel (%p2083) target = $region96
      $region95: #{ncf_forward.1} parent=91 // pred_region
        %p2086 = scmp.lt.s32.totalorder %s29, 2
        %s2087 = scalar_select %p2086, %s29, 2
        %s2088 = scalar_lea.vmem %s16, %s2087
      $region96: #{ncf_forward.1} parent=91 // pred_fallthru
        _
    $region92: #{ncf_forward.1} parent=5 // pred_fallthru
      _
  $region6: #{ncf_forward.1} parent=0 // loop_footer
    %s27 = sadd.s32 1, %s23
  $region7: #{ncf_forward.1} parent=0 // loop_footer_branch
    %22 = sbr.rel target = $region3
  $region8: #{ncf_forward.1} parent=0 // loop_exit
    _

</llo_original>
